<compile_context>
chip_gen: v6e
topology: v6e:2x2x1
jax: 0.10.0
libtpu: 0.0.40
codegen_flags: <defaults>
</compile_context>

<pallas_src>
import jax
import jax.numpy as jnp
from jax.experimental import pallas as pl
from jax.experimental.pallas import tpu as pltpu

LANE = 128  # channel padding target (one full vreg lane width)


def _round_up(x, m):
    return (x + m - 1) // m * m


# ----------------------------------------------------------------------------
# Fused Pallas kernel: all RelConv layers + ReLU + concat + final Linear
# ----------------------------------------------------------------------------
def _make_fused_kernel(num_layers):
    L = num_layers

    def kernel(x_ref, a_ref, w_ref, b_ref, wf_ref, bf_ref, mask_ref, out_ref):
        # h: current layer input, bf16 [N_pad, 128] (padded lanes/rows are zero)
        h = x_ref[...]
        n_pad = h.shape[0]
        acc = jnp.zeros((n_pad, LANE), jnp.float32)   # final-linear accumulator

        for l in range(L):  # static unroll; L small and known at trace time
            # One wide projection: columns are [w1 | w2 | wr | wf_seg_l], each
            # zero-padded to 128 lanes -> single [N_pad,128]x[128,512] bf16 MXU
            # matmul with f32 accumulation.
            xw = jnp.dot(h, w_ref[l], preferred_element_type=jnp.float32)
            xw1 = xw[:, 0 * LANE:1 * LANE].astype(jnp.bfloat16)
            xw2 = xw[:, 1 * LANE:2 * LANE].astype(jnp.bfloat16)
            root = xw[:, 2 * LANE:3 * LANE] + b_ref[l]
            # final-linear contribution of this layer's INPUT features
            acc = acc + xw[:, 3 * LANE:4 * LANE]

            # Mean aggregations: two dots on ref views (no sublane concat copy).
            agg = (jnp.dot(a_ref[0], xw1, preferred_element_type=jnp.float32)
                   + jnp.dot(a_ref[1], xw2, preferred_element_type=jnp.float32))

            # F.relu in f32, then zero padded node rows (defensive: keeps any
            # future node-dim reduction / streaming variant correct).
            h_f32 = jnp.maximum(root + agg, 0.0) * mask_ref[...]
            h = h_f32.astype(jnp.bfloat16)

        # final-linear contribution of the LAST layer's output features
        acc = acc + jnp.dot(h, wf_ref[...], preferred_element_type=jnp.float32)
        out_ref[...] = acc + bf_ref[...]     # lane-dense f32 [N_pad, 128] store

    return kernel


# ----------------------------------------------------------------------------
# Glue: normalized dense adjacency + padding / weight packing + pallas_call
# ----------------------------------------------------------------------------
def build_norm_adj(edge_index, num_nodes):
    src, dst = edge_index[0], edge_index[1]
    # adj[i, j] = #edges j -> i   (messages flowing source_to_target into i)
    adj = jnp.zeros((num_nodes, num_nodes), jnp.float32).at[dst, src].add(1.0)
    deg_in = jnp.clip(adj.sum(axis=1, keepdims=True), 1.0, None)
    deg_out = jnp.clip(adj.sum(axis=0)[:, None], 1.0, None)
    a1 = adj / deg_in       # mean over incoming edges (flow = source_to_target)
    a2 = adj.T / deg_out    # mean over outgoing edges (flow = target_to_source)
    return a1, a2


def _pad2(a, rows, cols, dtype=jnp.float32):
    out = jnp.zeros((rows, cols), dtype)
    return out.at[:a.shape[0], :a.shape[1]].set(a.astype(dtype))


def rel_cnn_forward(x, edge_index, params, *, num_layers, cat=True, lin=True,
                    norm_adj=None):
    # batch_norm=False and dropout=0.0 / eval mode -> both identities.
    assert cat and lin, "fused Pallas path implements the default cat=True, lin=True config"
    n, c_in = x.shape
    c_out = params["convs"][0]["w1"].shape[1]
    n_pad = _round_up(max(n, 1), LANE)   # 128-aligned rows AND contraction dim

    # Normalized adjacency (hoistable if edge_index is static across calls).
    if norm_adj is None:
        norm_adj = build_norm_adj(edge_index, n)
    a1, a2 = norm_adj
    a_pack = jnp.zeros((2, n_pad, n_pad), jnp.float32)
    a_pack = a_pack.at[0, :n, :n].set(a1).at[1, :n, :n].set(a2)
    a_pack = a_pack.astype(jnp.bfloat16)

    x_pad = _pad2(x, n_pad, LANE, jnp.bfloat16)

    # Per-layer fused weights [w1 | w2 | wr | wf_seg_l], each padded to 128
    # lanes (wf_seg_l = final-linear rows matching this layer's INPUT segment).
    fw = params["final_w"]                                # [c_in + L*c_out, c_out]
    w_all, b_all = [], []
    for l in range(num_layers):
        p = params["convs"][l]
        cin_l = p["w1"].shape[0]
        if l == 0:
            wf_seg = fw[:c_in]
        else:
            wf_seg = fw[c_in + (l - 1) * c_out: c_in + l * c_out]
        w = jnp.zeros((LANE, 4 * LANE), jnp.float32)
        w = w.at[:cin_l, 0 * LANE:0 * LANE + c_out].set(p["w1"])
        w = w.at[:cin_l, 1 * LANE:1 * LANE + c_out].set(p["w2"])
        w = w.at[:cin_l, 2 * LANE:2 * LANE + c_out].set(p["wr"])
        w = w.at[:wf_seg.shape[0], 3 * LANE:3 * LANE + c_out].set(wf_seg)
        w_all.append(w.astype(jnp.bfloat16))
        b_all.append(_pad2(p["br"], 1, LANE))
    w_all = jnp.stack(w_all)                              # [L, 128, 512] bf16
    b_all = jnp.stack(b_all)                              # [L, 1, 128]   f32

    # Last final-linear segment (applies to the last layer's OUTPUT features).
    wf_last = _pad2(fw[c_in + (num_layers - 1) * c_out:], LANE, LANE,
                    jnp.bfloat16)                         # [128, 128] bf16
    bf = _pad2(params["final_b"], 1, LANE)                # [1, 128]   f32
    row_mask = (jnp.arange(n_pad) < n).astype(jnp.float32)[:, None]  # [N_pad, 1]

    args = (x_pad, a_pack, w_all, b_all, wf_last, bf, row_mask)

    # --- VMEM budget: inputs + output + live in-kernel intermediates ---------
    in_bytes = sum(int(a.size) * a.dtype.itemsize for a in args)
    out_bytes = n_pad * LANE * 4
    interm_bytes = (n_pad * 4 * LANE * 4          # xw (f32, 512 lanes)
                    + n_pad * 2 * LANE * 2        # xw1/xw2 bf16 copies
                    + 6 * n_pad * LANE * 4)       # root/agg/acc/h temporaries
    needed = in_bytes + out_bytes + interm_bytes

    try:
        info = pltpu.get_tpu_info()
        vmem_cap = int(getattr(info, "vmem_capacity_bytes", 64 * 1024 * 1024))
    except Exception:  # pragma: no cover - defensive fallback
        vmem_cap = 64 * 1024 * 1024
    budget = int(0.72 * vmem_cap)   # leave headroom for compiler scratch
    if needed > budget:
        # TODO(synk): add a node-row-tiled streaming path (grid over adjacency
        # row tiles, layer as an outer 'arbitrary' axis, h/xw in VMEM scratch,
        # row axis 'parallel' for v7x megacore) for graphs whose dense
        # adjacency no longer fits fully resident in VMEM.
        raise ValueError("graph too large for the fused VMEM-resident RelCNN kernel")
    vmem_limit = int(min(max(needed + (4 << 20), 16 << 20), budget))

    flops = 0
    for _ in range(num_layers):
        flops += 2 * n_pad * LANE * 4 * LANE            # fused projection
        flops += 2 * 2 * n_pad * n_pad * LANE           # two mean aggregations
    flops += 2 * n_pad * LANE * LANE                    # last final-linear seg

    vmem_spec = pl.BlockSpec(memory_space=pltpu.MemorySpace.VMEM)
    out_pad = pl.pallas_call(
        _make_fused_kernel(num_layers),
        out_shape=jax.ShapeDtypeStruct((n_pad, LANE), jnp.float32),
        in_specs=[vmem_spec] * len(args),
        out_specs=vmem_spec,
        compiler_params=pltpu.CompilerParams(vmem_limit_bytes=vmem_limit),
        cost_estimate=pl.CostEstimate(flops=flops, transcendentals=0,
                                      bytes_accessed=in_bytes + out_bytes),
    )(*args)

    return out_pad[:n, :c_out]


# ----------------------------------------------------------------------------
# Deterministic parameter init (synthetic, matches shapes of RelCNN.__init__)
# ----------------------------------------------------------------------------
def init_params(key, in_channels, out_channels, num_layers, cat=True, lin=True):
    params = {"convs": []}
    c_in = in_channels
    for _ in range(num_layers):
        key, k1, k2, k3, k4 = jax.random.split(key, 5)
        scale = 1.0 / jnp.sqrt(jnp.float32(c_in))
        params["convs"].append({
            "w1": jax.random.uniform(k1, (c_in, out_channels), jnp.float32,
                                     -scale, scale),          # lin1 (no bias)
            "w2": jax.random.uniform(k2, (c_in, out_channels), jnp.float32,
                                     -scale, scale),          # lin2 (no bias)
            "wr": jax.random.uniform(k3, (c_in, out_channels), jnp.float32,
                                     -scale, scale),          # root weight
            "br": jax.random.uniform(k4, (1, out_channels), jnp.float32,
                                     -scale, scale),          # root bias
        })
        c_in = out_channels
    final_in = in_channels + num_layers * out_channels if cat else out_channels
    if lin:
        key, k1, k2 = jax.random.split(key, 3)
        scale = 1.0 / jnp.sqrt(jnp.float32(final_in))
        params["final_w"] = jax.random.uniform(k1, (final_in, out_channels),
                                               jnp.float32, -scale, scale)
        params["final_b"] = jax.random.uniform(k2, (1, out_channels),
                                               jnp.float32, -scale, scale)
    return params


# ----------------------------------------------------------------------------
# Pure-JAX f32 reference (same math, no Pallas) for the correctness check
# ----------------------------------------------------------------------------
def rel_cnn_reference(x, edge_index, params, *, num_layers, cat=True, lin=True):
    n = x.shape[0]
    a1, a2 = build_norm_adj(edge_index, n)
    xs = [x]
    for layer in range(num_layers):
        p = params["convs"][layer]
        h = (xs[-1] @ p["wr"] + p["br"]
             + a1 @ (xs[-1] @ p["w1"])
             + a2 @ (xs[-1] @ p["w2"]))
        xs.append(jnp.maximum(h, 0.0))
    h = jnp.concatenate(xs, axis=-1) if cat else xs[-1]
    if lin:
        h = h @ params["final_w"] + params["final_b"]
    return h


if __name__ == "__main__":
    N = 16            # number of graph nodes
    IN_CHANNELS = 8
    OUT_CHANNELS = 32
    NUM_LAYERS = 2
    NUM_EDGES = 40

    key = jax.random.PRNGKey(0)
    kx, ke1, ke2, kp = jax.random.split(key, 4)
    x = jax.random.normal(kx, (N, IN_CHANNELS), jnp.float32)
    edge_index = jnp.stack([
        jax.random.randint(ke1, (NUM_EDGES,), 0, N),
        jax.random.randint(ke2, (NUM_EDGES,), 0, N),
    ])  # [2, E], row 0 = source, row 1 = target

    params = init_params(kp, IN_CHANNELS, OUT_CHANNELS, NUM_LAYERS)

    out = rel_cnn_forward(x, edge_index, params,
                          num_layers=NUM_LAYERS, cat=True, lin=True)
    out = jax.block_until_ready(out)

    ref = rel_cnn_reference(x, edge_index, params,
                            num_layers=NUM_LAYERS, cat=True, lin=True)
    assert out.shape == (N, OUT_CHANNELS), out.shape
    # bf16 MXU operands with f32 accumulation -> tolerance appropriate for bf16.
    assert jnp.allclose(out, ref, atol=5e-2, rtol=5e-2), (
        "mismatch vs reference; max abs err = %f"
        % float(jnp.max(jnp.abs(out - ref))))

    print("KERNEL_OK")
</pallas_src>

<mosaic_0001>
module attributes {stable_mosaic.version = 11 : i64} {
  func.func @kernel(%arg0: memref<128x128xbf16, #tpu.memory_space<vmem>>, %arg1: memref<2x128x128xbf16, #tpu.memory_space<vmem>>, %arg2: memref<2x128x512xbf16, #tpu.memory_space<vmem>>, %arg3: memref<2x1x128xf32, #tpu.memory_space<vmem>>, %arg4: memref<128x128xbf16, #tpu.memory_space<vmem>>, %arg5: memref<1x128xf32, #tpu.memory_space<vmem>>, %arg6: memref<128x1xf32, #tpu.memory_space<vmem>>, %arg7: memref<128x128xf32, #tpu.memory_space<vmem>>) attributes {dimension_semantics = [], scalar_prefetch = 0 : i64, scratch_operands = 0 : i64, tpu.core_type = #tpu.core_type<tc>} {
    %c0 = arith.constant 0 : index
    %c0_0 = arith.constant 0 : index
    %0 = vector.load %arg0[%c0, %c0_0] : memref<128x128xbf16, #tpu.memory_space<vmem>>, vector<128x128xbf16>
    %cst = arith.constant 0.000000e+00 : f32
    %1 = vector.broadcast %cst : f32 to vector<128x128xf32>
    %c0_1 = arith.constant 0 : index
    %c0_2 = arith.constant 0 : index
    %c0_3 = arith.constant 0 : index
    %2 = vector.load %arg2[%c0_1, %c0_2, %c0_3] : memref<2x128x512xbf16, #tpu.memory_space<vmem>>, vector<1x128x512xbf16>
    %3 = vector.shape_cast %2 : vector<1x128x512xbf16> to vector<128x512xbf16>
    %cst_4 = arith.constant dense<0.000000e+00> : vector<128x512xf32>
    %4 = tpu.matmul %0, %3, %cst_4 {dimension_numbers = #tpu.dot_dimension_numbers<[1], [0], [0], [1], [0, 0, 1, 1], [], []>} : vector<128x128xbf16>, vector<128x512xbf16>, vector<128x512xf32> -> vector<128x512xf32>
    %5 = vector.extract_strided_slice %4 {offsets = [0, 0], sizes = [128, 128], strides = [1, 1]} : vector<128x512xf32> to vector<128x128xf32>
    %6 = arith.truncf %5 : vector<128x128xf32> to vector<128x128xbf16>
    %7 = vector.extract_strided_slice %4 {offsets = [0, 128], sizes = [128, 128], strides = [1, 1]} : vector<128x512xf32> to vector<128x128xf32>
    %8 = arith.truncf %7 : vector<128x128xf32> to vector<128x128xbf16>
    %9 = vector.extract_strided_slice %4 {offsets = [0, 256], sizes = [128, 128], strides = [1, 1]} : vector<128x512xf32> to vector<128x128xf32>
    %c0_5 = arith.constant 0 : index
    %c0_6 = arith.constant 0 : index
    %c0_7 = arith.constant 0 : index
    %10 = vector.load %arg3[%c0_5, %c0_6, %c0_7] : memref<2x1x128xf32, #tpu.memory_space<vmem>>, vector<1x1x128xf32>
    %11 = vector.shape_cast %10 : vector<1x1x128xf32> to vector<1x128xf32>
    %12 = vector.broadcast %11 : vector<1x128xf32> to vector<128x128xf32>
    %13 = arith.addf %9, %12 : vector<128x128xf32>
    %14 = vector.extract_strided_slice %4 {offsets = [0, 384], sizes = [128, 128], strides = [1, 1]} : vector<128x512xf32> to vector<128x128xf32>
    %15 = arith.addf %1, %14 : vector<128x128xf32>
    %c0_8 = arith.constant 0 : index
    %c0_9 = arith.constant 0 : index
    %c0_10 = arith.constant 0 : index
    %16 = vector.load %arg1[%c0_8, %c0_9, %c0_10] : memref<2x128x128xbf16, #tpu.memory_space<vmem>>, vector<1x128x128xbf16>
    %17 = vector.shape_cast %16 : vector<1x128x128xbf16> to vector<128x128xbf16>
    %cst_11 = arith.constant dense<0.000000e+00> : vector<128x128xf32>
    %18 = tpu.matmul %17, %6, %cst_11 {dimension_numbers = #tpu.dot_dimension_numbers<[1], [0], [0], [1], [0, 0, 1, 1], [], []>} : vector<128x128xbf16>, vector<128x128xbf16>, vector<128x128xf32> -> vector<128x128xf32>
    %c1 = arith.constant 1 : index
    %c0_12 = arith.constant 0 : index
    %c0_13 = arith.constant 0 : index
    %19 = vector.load %arg1[%c1, %c0_12, %c0_13] : memref<2x128x128xbf16, #tpu.memory_space<vmem>>, vector<1x128x128xbf16>
    %20 = vector.shape_cast %19 : vector<1x128x128xbf16> to vector<128x128xbf16>
    %cst_14 = arith.constant dense<0.000000e+00> : vector<128x128xf32>
    %21 = tpu.matmul %20, %8, %cst_14 {dimension_numbers = #tpu.dot_dimension_numbers<[1], [0], [0], [1], [0, 0, 1, 1], [], []>} : vector<128x128xbf16>, vector<128x128xbf16>, vector<128x128xf32> -> vector<128x128xf32>
    %22 = arith.addf %18, %21 : vector<128x128xf32>
    %23 = arith.addf %13, %22 : vector<128x128xf32>
    %cst_15 = arith.constant 0.000000e+00 : f32
    %24 = vector.broadcast %cst_15 : f32 to vector<128x128xf32>
    %25 = arith.maximumf %23, %24 : vector<128x128xf32>
    %c0_16 = arith.constant 0 : index
    %c0_17 = arith.constant 0 : index
    %26 = vector.load %arg6[%c0_16, %c0_17] : memref<128x1xf32, #tpu.memory_space<vmem>>, vector<128x1xf32>
    %27 = vector.broadcast %26 : vector<128x1xf32> to vector<128x128xf32>
    %28 = arith.mulf %25, %27 : vector<128x128xf32>
    %29 = arith.truncf %28 : vector<128x128xf32> to vector<128x128xbf16>
    %c1_18 = arith.constant 1 : index
    %c0_19 = arith.constant 0 : index
    %c0_20 = arith.constant 0 : index
    %30 = vector.load %arg2[%c1_18, %c0_19, %c0_20] : memref<2x128x512xbf16, #tpu.memory_space<vmem>>, vector<1x128x512xbf16>
    %31 = vector.shape_cast %30 : vector<1x128x512xbf16> to vector<128x512xbf16>
    %cst_21 = arith.constant dense<0.000000e+00> : vector<128x512xf32>
    %32 = tpu.matmul %29, %31, %cst_21 {dimension_numbers = #tpu.dot_dimension_numbers<[1], [0], [0], [1], [0, 0, 1, 1], [], []>} : vector<128x128xbf16>, vector<128x512xbf16>, vector<128x512xf32> -> vector<128x512xf32>
    %33 = vector.extract_strided_slice %32 {offsets = [0, 0], sizes = [128, 128], strides = [1, 1]} : vector<128x512xf32> to vector<128x128xf32>
    %34 = arith.truncf %33 : vector<128x128xf32> to vector<128x128xbf16>
    %35 = vector.extract_strided_slice %32 {offsets = [0, 128], sizes = [128, 128], strides = [1, 1]} : vector<128x512xf32> to vector<128x128xf32>
    %36 = arith.truncf %35 : vector<128x128xf32> to vector<128x128xbf16>
    %37 = vector.extract_strided_slice %32 {offsets = [0, 256], sizes = [128, 128], strides = [1, 1]} : vector<128x512xf32> to vector<128x128xf32>
    %c1_22 = arith.constant 1 : index
    %c0_23 = arith.constant 0 : index
    %c0_24 = arith.constant 0 : index
    %38 = vector.load %arg3[%c1_22, %c0_23, %c0_24] : memref<2x1x128xf32, #tpu.memory_space<vmem>>, vector<1x1x128xf32>
    %39 = vector.shape_cast %38 : vector<1x1x128xf32> to vector<1x128xf32>
    %40 = vector.broadcast %39 : vector<1x128xf32> to vector<128x128xf32>
    %41 = arith.addf %37, %40 : vector<128x128xf32>
    %42 = vector.extract_strided_slice %32 {offsets = [0, 384], sizes = [128, 128], strides = [1, 1]} : vector<128x512xf32> to vector<128x128xf32>
    %43 = arith.addf %15, %42 : vector<128x128xf32>
    %c0_25 = arith.constant 0 : index
    %c0_26 = arith.constant 0 : index
    %c0_27 = arith.constant 0 : index
    %44 = vector.load %arg1[%c0_25, %c0_26, %c0_27] : memref<2x128x128xbf16, #tpu.memory_space<vmem>>, vector<1x128x128xbf16>
    %45 = vector.shape_cast %44 : vector<1x128x128xbf16> to vector<128x128xbf16>
    %cst_28 = arith.constant dense<0.000000e+00> : vector<128x128xf32>
    %46 = tpu.matmul %45, %34, %cst_28 {dimension_numbers = #tpu.dot_dimension_numbers<[1], [0], [0], [1], [0, 0, 1, 1], [], []>} : vector<128x128xbf16>, vector<128x128xbf16>, vector<128x128xf32> -> vector<128x128xf32>
    %c1_29 = arith.constant 1 : index
    %c0_30 = arith.constant 0 : index
    %c0_31 = arith.constant 0 : index
    %47 = vector.load %arg1[%c1_29, %c0_30, %c0_31] : memref<2x128x128xbf16, #tpu.memory_space<vmem>>, vector<1x128x128xbf16>
    %48 = vector.shape_cast %47 : vector<1x128x128xbf16> to vector<128x128xbf16>
    %cst_32 = arith.constant dense<0.000000e+00> : vector<128x128xf32>
    %49 = tpu.matmul %48, %36, %cst_32 {dimension_numbers = #tpu.dot_dimension_numbers<[1], [0], [0], [1], [0, 0, 1, 1], [], []>} : vector<128x128xbf16>, vector<128x128xbf16>, vector<128x128xf32> -> vector<128x128xf32>
    %50 = arith.addf %46, %49 : vector<128x128xf32>
    %51 = arith.addf %41, %50 : vector<128x128xf32>
    %cst_33 = arith.constant 0.000000e+00 : f32
    %52 = vector.broadcast %cst_33 : f32 to vector<128x128xf32>
    %53 = arith.maximumf %51, %52 : vector<128x128xf32>
    %c0_34 = arith.constant 0 : index
    %c0_35 = arith.constant 0 : index
    %54 = vector.load %arg6[%c0_34, %c0_35] : memref<128x1xf32, #tpu.memory_space<vmem>>, vector<128x1xf32>
    %55 = vector.broadcast %54 : vector<128x1xf32> to vector<128x128xf32>
    %56 = arith.mulf %53, %55 : vector<128x128xf32>
    %57 = arith.truncf %56 : vector<128x128xf32> to vector<128x128xbf16>
    %c0_36 = arith.constant 0 : index
    %c0_37 = arith.constant 0 : index
    %58 = vector.load %arg4[%c0_36, %c0_37] : memref<128x128xbf16, #tpu.memory_space<vmem>>, vector<128x128xbf16>
    %cst_38 = arith.constant dense<0.000000e+00> : vector<128x128xf32>
    %59 = tpu.matmul %57, %58, %cst_38 {dimension_numbers = #tpu.dot_dimension_numbers<[1], [0], [0], [1], [0, 0, 1, 1], [], []>} : vector<128x128xbf16>, vector<128x128xbf16>, vector<128x128xf32> -> vector<128x128xf32>
    %60 = arith.addf %43, %59 : vector<128x128xf32>
    %c0_39 = arith.constant 0 : index
    %c0_40 = arith.constant 0 : index
    %61 = vector.load %arg5[%c0_39, %c0_40] : memref<1x128xf32, #tpu.memory_space<vmem>>, vector<1x128xf32>
    %62 = vector.broadcast %61 : vector<1x128xf32> to vector<128x128xf32>
    %63 = arith.addf %60, %62 : vector<128x128xf32>
    %c0_41 = arith.constant 0 : index
    %c0_42 = arith.constant 0 : index
    %64 = vector.load %arg7[%c0_41, %c0_42] : memref<128x128xf32, #tpu.memory_space<vmem>>, vector<128x128xf32>
    tpu.vector_store %arg7[%c0_41, %c0_42], %63 {strides = array<i32>} : memref<128x128xf32, #tpu.memory_space<vmem>>, vector<128x128xf32>,
    return
  }
}

</mosaic_0001>

<llo_original>
// kernel: tpu_custom_call.1
$region0: #{tpu_custom_call.1}
  #allocation0 [shape = 'u32[]', space=smem, size = 0x4, offset = 0x4, fixed_abs, tag = 'smem constant byte address 0x4 - core index']
  #allocation1 [shape = 'u32[144,128]{1,0:T(1,128)}', space=vmem, size = 0x12000, scoped, tag = 'internal scratch']
  %s0 = inlined_call_operand.hbm [shape: bf16[128,128], index: 0, kind: input, shape index: {}]
  %s1 = inlined_call_operand.vmem [shape: bf16[2,128,128], index: 1, kind: input, shape index: {}]
  %s2 = inlined_call_operand.hbm [shape: bf16[2,128,512], index: 2, kind: input, shape index: {}]
  %s3 = inlined_call_operand.vmem [shape: f32[2,1,128], index: 3, kind: input, shape index: {}]
  %s4 = inlined_call_operand.hbm [shape: bf16[128,128], index: 4, kind: input, shape index: {}]
  %s5 = inlined_call_operand.vmem [shape: f32[1,128], index: 5, kind: input, shape index: {}]
  %s6 = inlined_call_operand.vmem [shape: f32[128,1], index: 6, kind: input, shape index: {}]
  %s7 = inlined_call_operand.hbm [shape: f32[128,128], index: 7, kind: output, shape index: {}]
  %s8 = sld [smem:[#allocation0]]
  $region50: #{tpu_custom_call.1} parent=0
    _
  %s10 = ssub.s32 1, %s8
  %s11 = scalar_select 0, %s10, %s8
  $region1: #{tpu_custom_call.1} parent=0
    #allocation2 [shape = 'u8[32768]{0}', space=vmem, size = 0x8000, scoped, tag = 'input window, operand 0, single buffered']
    #allocation3 [shape = 's32[1]{0}', space=sflag, size = 0x4, scoped, tag = 'scoped memory for tpu_custom_call.1']
    #allocation4 [shape = 's32[1]{0}', space=sflag, size = 0x4, scoped, tag = 'scoped memory for tpu_custom_call.1']
    #allocation5 [shape = 'u8[262144]{0}', space=vmem, size = 0x40000, scoped, tag = 'input window, operand 2, single buffered']
    #allocation6 [shape = 's32[1]{0}', space=sflag, size = 0x4, scoped, tag = 'scoped memory for tpu_custom_call.1']
    #allocation7 [shape = 'u8[32768]{0}', space=vmem, size = 0x8000, scoped, tag = 'input window, operand 4, single buffered']
    #allocation8 [shape = 'u8[65536]{0}', space=vmem, size = 0x10000, scoped, tag = 'output window, operand 0, single buffered']
    %12 = vsyncpa [#allocation3], 0
    %13 = vsyncpa [#allocation6], 0
    %14 = vsyncpa [#allocation4], 0
    // Predicated region
    $region2: #{tpu_custom_call.1} parent=1 // pred_check
      _
    $region3: #{tpu_custom_call.1} parent=1 // pred_check_branch
      %16 = sbr.rel (0) target = $region5
    $region4: #{tpu_custom_call.1} parent=1 // pred_region
      %s18 = ssub.s32 1024, 1024
      %19 = vsyncadd [#allocation3], %s18
      %s20 = sshll.u32 [#allocation2], 4
      %s21 = int_to_ptr.vmem [resolvable:$true] %s20
      %26 = dma.hbm_to_vmem [thread:$0]  %s0, 1024, %s21, [#allocation3], 64, 64, 4
    $region5: #{tpu_custom_call.1} parent=1 // pred_fallthru
      _
    // Predicated region
    $region6: #{tpu_custom_call.1} parent=1 // pred_check
      _
    $region7: #{tpu_custom_call.1} parent=1 // pred_check_branch
      %28 = sbr.rel (0) target = $region9
    $region8: #{tpu_custom_call.1} parent=1 // pred_region
      _
    $region9: #{tpu_custom_call.1} parent=1 // pred_fallthru
      _
    // Predicated region
    $region10: #{tpu_custom_call.1} parent=1 // pred_check
      _
    $region11: #{tpu_custom_call.1} parent=1 // pred_check_branch
      %30 = sbr.rel (0) target = $region13
    $region12: #{tpu_custom_call.1} parent=1 // pred_region
      %s32 = ssub.s32 8192, 8192
      %33 = vsyncadd [#allocation6], %s32
      %s34 = sshll.u32 [#allocation5], 4
      %s35 = int_to_ptr.vmem [resolvable:$true] %s34
      %40 = dma.hbm_to_vmem [thread:$0]  %s2, 8192, %s35, [#allocation6], 256, 256, 16
    $region13: #{tpu_custom_call.1} parent=1 // pred_fallthru
      _
    // Predicated region
    $region14: #{tpu_custom_call.1} parent=1 // pred_check
      _
    $region15: #{tpu_custom_call.1} parent=1 // pred_check_branch
      %42 = sbr.rel (0) target = $region17
    $region16: #{tpu_custom_call.1} parent=1 // pred_region
      _
    $region17: #{tpu_custom_call.1} parent=1 // pred_fallthru
      _
    // Predicated region
    $region18: #{tpu_custom_call.1} parent=1 // pred_check
      _
    $region19: #{tpu_custom_call.1} parent=1 // pred_check_branch
      %44 = sbr.rel (0) target = $region21
    $region20: #{tpu_custom_call.1} parent=1 // pred_region
      %s46 = ssub.s32 1024, 1024
      %47 = vsyncadd [#allocation6], %s46
      %s48 = sshll.u32 [#allocation7], 4
      %s49 = int_to_ptr.vmem [resolvable:$true] %s48
      %54 = dma.hbm_to_vmem [thread:$0]  %s4, 1024, %s49, [#allocation6], 64, 64, 4
    $region21: #{tpu_custom_call.1} parent=1 // pred_fallthru
      _
    // Predicated region
    $region22: #{tpu_custom_call.1} parent=1 // pred_check
      _
    $region23: #{tpu_custom_call.1} parent=1 // pred_check_branch
      %56 = sbr.rel (0) target = $region25
    $region24: #{tpu_custom_call.1} parent=1 // pred_region
      _
    $region25: #{tpu_custom_call.1} parent=1 // pred_fallthru
      _
    // Predicated region
    $region26: #{tpu_custom_call.1} parent=1 // pred_check
      _
    $region27: #{tpu_custom_call.1} parent=1 // pred_check_branch
      %58 = sbr.rel (0) target = $region29
    $region28: #{tpu_custom_call.1} parent=1 // pred_region
      _
    $region29: #{tpu_custom_call.1} parent=1 // pred_fallthru
      _
    // Predicated region
    $region30: #{tpu_custom_call.1} parent=1 // pred_check
      _
    $region31: #{tpu_custom_call.1} parent=1 // pred_check_branch
      %60 = sbr.rel (0) target = $region33
    $region32: #{tpu_custom_call.1} parent=1 // pred_region
      %61 = dma.done [#allocation3], 1024
    $region33: #{tpu_custom_call.1} parent=1 // pred_fallthru
      _
    // Predicated region
    $region34: #{tpu_custom_call.1} parent=1 // pred_check
      _
    $region35: #{tpu_custom_call.1} parent=1 // pred_check_branch
      %63 = sbr.rel (0) target = $region37
    $region36: #{tpu_custom_call.1} parent=1 // pred_region
      %64 = dma.done [#allocation6], 8192
    $region37: #{tpu_custom_call.1} parent=1 // pred_fallthru
      _
    // Predicated region
    $region38: #{tpu_custom_call.1} parent=1 // pred_check
      _
    $region39: #{tpu_custom_call.1} parent=1 // pred_check_branch
      %66 = sbr.rel (0) target = $region41
    $region40: #{tpu_custom_call.1} parent=1 // pred_region
      %67 = dma.done [#allocation6], 1024
    $region41: #{tpu_custom_call.1} parent=1 // pred_fallthru
      _
    %v69 = vld [vmem:[#allocation2] sm:$0xf]
    %v70 = vld [vmem:[#allocation2 + $0x4] sm:$0xf]
    %v71 = vld [vmem:[#allocation2 + $0x8] sm:$0xf]
    %v72 = vld [vmem:[#allocation2 + $0xc] sm:$0xf]
    %v73 = vld [vmem:[#allocation2 + $0x10] sm:$0xf]
    %v74 = vld [vmem:[#allocation2 + $0x14] sm:$0xf]
    %v75 = vld [vmem:[#allocation2 + $0x18] sm:$0xf]
    %v76 = vld [vmem:[#allocation2 + $0x1c] sm:$0xf]
    %v77 = vld [vmem:[#allocation2 + $0x20] sm:$0xf]
    %v78 = vld [vmem:[#allocation2 + $0x24] sm:$0xf]
    %v79 = vld [vmem:[#allocation2 + $0x28] sm:$0xf]
    %v80 = vld [vmem:[#allocation2 + $0x2c] sm:$0xf]
    %v81 = vld [vmem:[#allocation2 + $0x30] sm:$0xf]
    %v82 = vld [vmem:[#allocation2 + $0x34] sm:$0xf]
    %v83 = vld [vmem:[#allocation2 + $0x38] sm:$0xf]
    %v84 = vld [vmem:[#allocation2 + $0x3c] sm:$0xf]
    %v85 = vld [vmem:[#allocation5] sm:$0xff]
    %v86 = vld [vmem:[#allocation5 + $0x8] sm:$0xff]
    %v87 = vld [vmem:[#allocation5 + $0x10] sm:$0xff]
    %v88 = vld [vmem:[#allocation5 + $0x18] sm:$0xff]
    %v89 = vld [vmem:[#allocation5 + $0x20] sm:$0xff]
    %v90 = vld [vmem:[#allocation5 + $0x28] sm:$0xff]
    %v91 = vld [vmem:[#allocation5 + $0x30] sm:$0xff]
    %v92 = vld [vmem:[#allocation5 + $0x38] sm:$0xff]
    %v93 = vld [vmem:[#allocation5 + $0x40] sm:$0xff]
    %v94 = vld [vmem:[#allocation5 + $0x48] sm:$0xff]
    %v95 = vld [vmem:[#allocation5 + $0x50] sm:$0xff]
    %v96 = vld [vmem:[#allocation5 + $0x58] sm:$0xff]
    %v97 = vld [vmem:[#allocation5 + $0x60] sm:$0xff]
    %v98 = vld [vmem:[#allocation5 + $0x68] sm:$0xff]
    %v99 = vld [vmem:[#allocation5 + $0x70] sm:$0xff]
    %v100 = vld [vmem:[#allocation5 + $0x78] sm:$0xff]
    %v101 = vld [vmem:[#allocation5 + $0x80] sm:$0xff]
    %v102 = vld [vmem:[#allocation5 + $0x88] sm:$0xff]
    %v103 = vld [vmem:[#allocation5 + $0x90] sm:$0xff]
    %v104 = vld [vmem:[#allocation5 + $0x98] sm:$0xff]
    %v105 = vld [vmem:[#allocation5 + $0xa0] sm:$0xff]
    %v106 = vld [vmem:[#allocation5 + $0xa8] sm:$0xff]
    %v107 = vld [vmem:[#allocation5 + $0xb0] sm:$0xff]
    %v108 = vld [vmem:[#allocation5 + $0xb8] sm:$0xff]
    %v109 = vld [vmem:[#allocation5 + $0xc0] sm:$0xff]
    %v110 = vld [vmem:[#allocation5 + $0xc8] sm:$0xff]
    %v111 = vld [vmem:[#allocation5 + $0xd0] sm:$0xff]
    %v112 = vld [vmem:[#allocation5 + $0xd8] sm:$0xff]
    %v113 = vld [vmem:[#allocation5 + $0xe0] sm:$0xff]
    %v114 = vld [vmem:[#allocation5 + $0xe8] sm:$0xff]
    %v115 = vld [vmem:[#allocation5 + $0xf0] sm:$0xff]
    %v116 = vld [vmem:[#allocation5 + $0xf8] sm:$0xff]
    %v133 = vunpack.c.l.b16 %v69
    %v134 = vunpack.c.l.b16 %v70
    %v135 = vunpack.c.l.b16 %v71
    %v136 = vunpack.c.l.b16 %v72
    %v137 = vunpack.c.l.b16 %v73
    %v138 = vunpack.c.l.b16 %v74
    %v139 = vunpack.c.l.b16 %v75
    %v140 = vunpack.c.l.b16 %v76
    %v141 = vunpack.c.l.b16 %v77
    %v142 = vunpack.c.l.b16 %v78
    %v143 = vunpack.c.l.b16 %v79
    %v144 = vunpack.c.l.b16 %v80
    %v145 = vunpack.c.l.b16 %v81
    %v146 = vunpack.c.l.b16 %v82
    %v147 = vunpack.c.l.b16 %v83
    %v148 = vunpack.c.l.b16 %v84
    %v149 = vpack.c.b16 %v134, %v133
    %v150 = vpack.c.b16 %v136, %v135
    %v151 = vpack.c.b16 %v138, %v137
    %v152 = vpack.c.b16 %v140, %v139
    %v153 = vpack.c.b16 %v142, %v141
    %v154 = vpack.c.b16 %v144, %v143
    %v155 = vpack.c.b16 %v146, %v145
    %v156 = vpack.c.b16 %v148, %v147
    %v197 = vunpack.c.l.b16 %v85
    %v198 = vunpack.c.h.b16 %v85
    %v199 = vunpack.c.l.b16 %v86
    %v200 = vunpack.c.h.b16 %v86
    %v201 = vunpack.c.l.b16 %v87
    %v202 = vunpack.c.h.b16 %v87
    %v203 = vunpack.c.l.b16 %v88
    %v204 = vunpack.c.h.b16 %v88
    %v205 = vunpack.c.l.b16 %v89
    %v206 = vunpack.c.h.b16 %v89
    %v207 = vunpack.c.l.b16 %v90
    %v208 = vunpack.c.h.b16 %v90
    %v209 = vunpack.c.l.b16 %v91
    %v210 = vunpack.c.h.b16 %v91
    %v211 = vunpack.c.l.b16 %v92
    %v212 = vunpack.c.h.b16 %v92
    %v213 = vunpack.c.l.b16 %v93
    %v214 = vunpack.c.h.b16 %v93
    %v215 = vunpack.c.l.b16 %v94
    %v216 = vunpack.c.h.b16 %v94
    %v217 = vunpack.c.l.b16 %v95
    %v218 = vunpack.c.h.b16 %v95
    %v219 = vunpack.c.l.b16 %v96
    %v220 = vunpack.c.h.b16 %v96
    %v221 = vunpack.c.l.b16 %v97
    %v222 = vunpack.c.h.b16 %v97
    %v223 = vunpack.c.l.b16 %v98
    %v224 = vunpack.c.h.b16 %v98
    %v225 = vunpack.c.l.b16 %v99
    %v226 = vunpack.c.h.b16 %v99
    %v227 = vunpack.c.l.b16 %v100
    %v228 = vunpack.c.h.b16 %v100
    %v229 = vunpack.c.l.b16 %v101
    %v230 = vunpack.c.h.b16 %v101
    %v231 = vunpack.c.l.b16 %v102
    %v232 = vunpack.c.h.b16 %v102
    %v233 = vunpack.c.l.b16 %v103
    %v234 = vunpack.c.h.b16 %v103
    %v235 = vunpack.c.l.b16 %v104
    %v236 = vunpack.c.h.b16 %v104
    %v237 = vunpack.c.l.b16 %v105
    %v238 = vunpack.c.h.b16 %v105
    %v239 = vunpack.c.l.b16 %v106
    %v240 = vunpack.c.h.b16 %v106
    %v241 = vunpack.c.l.b16 %v107
    %v242 = vunpack.c.h.b16 %v107
    %v243 = vunpack.c.l.b16 %v108
    %v244 = vunpack.c.h.b16 %v108
    %v245 = vunpack.c.l.b16 %v109
    %v246 = vunpack.c.h.b16 %v109
    %v247 = vunpack.c.l.b16 %v110
    %v248 = vunpack.c.h.b16 %v110
    %v249 = vunpack.c.l.b16 %v111
    %v250 = vunpack.c.h.b16 %v111
    %v251 = vunpack.c.l.b16 %v112
    %v252 = vunpack.c.h.b16 %v112
    %v253 = vunpack.c.l.b16 %v113
    %v254 = vunpack.c.h.b16 %v113
    %v255 = vunpack.c.l.b16 %v114
    %v256 = vunpack.c.h.b16 %v114
    %v257 = vunpack.c.l.b16 %v115
    %v258 = vunpack.c.h.b16 %v115
    %v259 = vunpack.c.l.b16 %v116
    %v260 = vunpack.c.h.b16 %v116
    %v261 = vpack.c.b16 %v201, %v197
    %v262 = vpack.c.b16 %v202, %v198
    %v263 = vpack.c.b16 %v203, %v199
    %v264 = vpack.c.b16 %v204, %v200
    %v265 = vpack.c.b16 %v209, %v205
    %v266 = vpack.c.b16 %v210, %v206
    %v267 = vpack.c.b16 %v211, %v207
    %v268 = vpack.c.b16 %v212, %v208
    %v269 = vpack.c.b16 %v217, %v213
    %v270 = vpack.c.b16 %v218, %v214
    %v271 = vpack.c.b16 %v219, %v215
    %v272 = vpack.c.b16 %v220, %v216
    %v273 = vpack.c.b16 %v225, %v221
    %v274 = vpack.c.b16 %v226, %v222
    %v275 = vpack.c.b16 %v227, %v223
    %v276 = vpack.c.b16 %v228, %v224
    %v277 = vpack.c.b16 %v233, %v229
    %v278 = vpack.c.b16 %v234, %v230
    %v279 = vpack.c.b16 %v235, %v231
    %v280 = vpack.c.b16 %v236, %v232
    %v281 = vpack.c.b16 %v241, %v237
    %v282 = vpack.c.b16 %v242, %v238
    %v283 = vpack.c.b16 %v243, %v239
    %v284 = vpack.c.b16 %v244, %v240
    %v285 = vpack.c.b16 %v249, %v245
    %v286 = vpack.c.b16 %v250, %v246
    %v287 = vpack.c.b16 %v251, %v247
    %v288 = vpack.c.b16 %v252, %v248
    %v289 = vpack.c.b16 %v257, %v253
    %v290 = vpack.c.b16 %v258, %v254
    %v291 = vpack.c.b16 %v259, %v255
    %v292 = vpack.c.b16 %v260, %v256
    %325 = vmatprep.subr.bf16.mxu0 %v290
    %326 = vmatpush1.bf16.msra.mxu0 %v289
    %327 = vmatprep.subr.bf16.mxu0 %v286
    %328 = vmatpush1.bf16.msra.mxu0 %v285
    %329 = vmatprep.subr.bf16.mxu0 %v282
    %330 = vmatpush1.bf16.msra.mxu0 %v281
    %331 = vmatprep.subr.bf16.mxu0 %v278
    %332 = vmatpush1.bf16.msra.mxu0 %v277
    %333 = vmatprep.subr.bf16.mxu0 %v274
    %334 = vmatpush1.bf16.msra.mxu0 %v273
    %335 = vmatprep.subr.bf16.mxu0 %v270
    %336 = vmatpush1.bf16.msra.mxu0 %v269
    %337 = vmatprep.subr.bf16.mxu0 %v266
    %338 = vmatpush1.bf16.msra.mxu0 %v265
    %339 = vmatprep.subr.bf16.mxu0 %v262
    %340 = vmatpush1.bf16.msra.mxu0 %v261
    %341 = vmatprep.subr.bf16.mxu0 0
    %342 = vmatpush2.bf16.msra.mxu0 0
    %343 = vmatprep.subr.bf16.mxu0 0
    %344 = vmatpush2.bf16.msra.mxu0 0
    %345 = vmatprep.subr.bf16.mxu0 0
    %346 = vmatpush2.bf16.msra.mxu0 0
    %347 = vmatprep.subr.bf16.mxu0 0
    %348 = vmatpush2.bf16.msra.mxu0 0
    %349 = vmatprep.subr.bf16.mxu0 0
    %350 = vmatpush2.bf16.msra.mxu0 0
    %351 = vmatprep.subr.bf16.mxu0 0
    %352 = vmatpush2.bf16.msra.mxu0 0
    %353 = vmatprep.subr.bf16.mxu0 0
    %354 = vmatpush2.bf16.msra.mxu0 0
    %355 = vmatprep.subr.bf16.mxu0 0
    %356 = vmatpush2.bf16.msra.mxu0 0
    %357 = vmatprep.mubr.bf16.mxu0 0
    %358 = vmatmul.mubr.bf16.gmra.mxu0 %v149
    %v359 = vpop.f32.mrf.mxu0
    %v360 = vadd.f32 0.0, %v359
    %v361 = vpop.f32.mrf.mxu0
    %v362 = vadd.f32 0.0, %v361
    %v363 = vpop.f32.mrf.mxu0
    %v364 = vadd.f32 0.0, %v363
    %v365 = vpop.f32.mrf.mxu0
    %v366 = vadd.f32 0.0, %v365
    %367 = vmatprep.mubr.bf16.mxu0 0
    %368 = vmatmul.mubr.bf16.gmra.mxu0 %v150
    %v369 = vpop.f32.mrf.mxu0
    %v370 = vadd.f32 0.0, %v369
    %v371 = vpop.f32.mrf.mxu0
    %v372 = vadd.f32 0.0, %v371
    %v373 = vpop.f32.mrf.mxu0
    %v374 = vadd.f32 0.0, %v373
    %v375 = vpop.f32.mrf.mxu0
    %v376 = vadd.f32 0.0, %v375
    %377 = vmatprep.mubr.bf16.mxu0 0
    %378 = vmatmul.mubr.bf16.gmra.mxu0 %v151
    %v379 = vpop.f32.mrf.mxu0
    %v380 = vadd.f32 0.0, %v379
    %v381 = vpop.f32.mrf.mxu0
    %v382 = vadd.f32 0.0, %v381
    %v383 = vpop.f32.mrf.mxu0
    %v384 = vadd.f32 0.0, %v383
    %v385 = vpop.f32.mrf.mxu0
    %v386 = vadd.f32 0.0, %v385
    %387 = vmatprep.mubr.bf16.mxu0 0
    %388 = vmatmul.mubr.bf16.gmra.mxu0 %v152
    %v389 = vpop.f32.mrf.mxu0
    %v390 = vadd.f32 0.0, %v389
    %v391 = vpop.f32.mrf.mxu0
    %v392 = vadd.f32 0.0, %v391
    %v393 = vpop.f32.mrf.mxu0
    %v394 = vadd.f32 0.0, %v393
    %v395 = vpop.f32.mrf.mxu0
    %v396 = vadd.f32 0.0, %v395
    %397 = vmatprep.mubr.bf16.mxu0 0
    %398 = vmatmul.mubr.bf16.gmra.mxu0 %v153
    %v399 = vpop.f32.mrf.mxu0
    %v400 = vadd.f32 0.0, %v399
    %v401 = vpop.f32.mrf.mxu0
    %v402 = vadd.f32 0.0, %v401
    %v403 = vpop.f32.mrf.mxu0
    %v404 = vadd.f32 0.0, %v403
    %v405 = vpop.f32.mrf.mxu0
    %v406 = vadd.f32 0.0, %v405
    %407 = vmatprep.mubr.bf16.mxu0 0
    %408 = vmatmul.mubr.bf16.gmra.mxu0 %v154
    %v409 = vpop.f32.mrf.mxu0
    %v410 = vadd.f32 0.0, %v409
    %v411 = vpop.f32.mrf.mxu0
    %v412 = vadd.f32 0.0, %v411
    %v413 = vpop.f32.mrf.mxu0
    %v414 = vadd.f32 0.0, %v413
    %v415 = vpop.f32.mrf.mxu0
    %v416 = vadd.f32 0.0, %v415
    %417 = vmatprep.mubr.bf16.mxu0 0
    %418 = vmatmul.mubr.bf16.gmra.mxu0 %v155
    %v419 = vpop.f32.mrf.mxu0
    %v420 = vadd.f32 0.0, %v419
    %v421 = vpop.f32.mrf.mxu0
    %v422 = vadd.f32 0.0, %v421
    %v423 = vpop.f32.mrf.mxu0
    %v424 = vadd.f32 0.0, %v423
    %v425 = vpop.f32.mrf.mxu0
    %v426 = vadd.f32 0.0, %v425
    %427 = vmatprep.mubr.bf16.mxu0 0
    %428 = vmatmul.mubr.bf16.gmra.mxu0 %v156
    %v429 = vpop.f32.mrf.mxu0
    %v430 = vadd.f32 0.0, %v429
    %v431 = vpop.f32.mrf.mxu0
    %v432 = vadd.f32 0.0, %v431
    %v433 = vpop.f32.mrf.mxu0
    %v434 = vadd.f32 0.0, %v433
    %v435 = vpop.f32.mrf.mxu0
    %v436 = vadd.f32 0.0, %v435
    %437 = vdwg.mxu0
    %438 = vmatprep.subr.bf16.mxu0 %v292
    %439 = vmatpush1.bf16.msra.mxu0 %v291
    %440 = vmatprep.subr.bf16.mxu0 %v288
    %441 = vmatpush1.bf16.msra.mxu0 %v287
    %442 = vmatprep.subr.bf16.mxu0 %v284
    %443 = vmatpush1.bf16.msra.mxu0 %v283
    %444 = vmatprep.subr.bf16.mxu0 %v280
    %445 = vmatpush1.bf16.msra.mxu0 %v279
    %446 = vmatprep.subr.bf16.mxu0 %v276
    %447 = vmatpush1.bf16.msra.mxu0 %v275
    %448 = vmatprep.subr.bf16.mxu0 %v272
    %449 = vmatpush1.bf16.msra.mxu0 %v271
    %450 = vmatprep.subr.bf16.mxu0 %v268
    %451 = vmatpush1.bf16.msra.mxu0 %v267
    %452 = vmatprep.subr.bf16.mxu0 %v264
    %453 = vmatpush1.bf16.msra.mxu0 %v263
    %454 = vmatprep.subr.bf16.mxu0 0
    %455 = vmatpush2.bf16.msra.mxu0 0
    %456 = vmatprep.subr.bf16.mxu0 0
    %457 = vmatpush2.bf16.msra.mxu0 0
    %458 = vmatprep.subr.bf16.mxu0 0
    %459 = vmatpush2.bf16.msra.mxu0 0
    %460 = vmatprep.subr.bf16.mxu0 0
    %461 = vmatpush2.bf16.msra.mxu0 0
    %462 = vmatprep.subr.bf16.mxu0 0
    %463 = vmatpush2.bf16.msra.mxu0 0
    %464 = vmatprep.subr.bf16.mxu0 0
    %465 = vmatpush2.bf16.msra.mxu0 0
    %466 = vmatprep.subr.bf16.mxu0 0
    %467 = vmatpush2.bf16.msra.mxu0 0
    %468 = vmatprep.subr.bf16.mxu0 0
    %469 = vmatpush2.bf16.msra.mxu0 0
    %470 = vmatprep.mubr.bf16.mxu0 0
    %471 = vmatmul.mubr.bf16.gmra.mxu0 %v149
    %v472 = vpop.f32.mrf.mxu0
    %v473 = vadd.f32 0.0, %v472
    %v474 = vpop.f32.mrf.mxu0
    %v475 = vadd.f32 0.0, %v474
    %v476 = vpop.f32.mrf.mxu0
    %v477 = vadd.f32 0.0, %v476
    %v478 = vpop.f32.mrf.mxu0
    %v479 = vadd.f32 0.0, %v478
    %480 = vmatprep.mubr.bf16.mxu0 0
    %481 = vmatmul.mubr.bf16.gmra.mxu0 %v150
    %v482 = vpop.f32.mrf.mxu0
    %v483 = vadd.f32 0.0, %v482
    %v484 = vpop.f32.mrf.mxu0
    %v485 = vadd.f32 0.0, %v484
    %v486 = vpop.f32.mrf.mxu0
    %v487 = vadd.f32 0.0, %v486
    %v488 = vpop.f32.mrf.mxu0
    %v489 = vadd.f32 0.0, %v488
    %490 = vmatprep.mubr.bf16.mxu0 0
    %491 = vmatmul.mubr.bf16.gmra.mxu0 %v151
    %v492 = vpop.f32.mrf.mxu0
    %v493 = vadd.f32 0.0, %v492
    %v494 = vpop.f32.mrf.mxu0
    %v495 = vadd.f32 0.0, %v494
    %v496 = vpop.f32.mrf.mxu0
    %v497 = vadd.f32 0.0, %v496
    %v498 = vpop.f32.mrf.mxu0
    %v499 = vadd.f32 0.0, %v498
    %500 = vmatprep.mubr.bf16.mxu0 0
    %501 = vmatmul.mubr.bf16.gmra.mxu0 %v152
    %v502 = vpop.f32.mrf.mxu0
    %v503 = vadd.f32 0.0, %v502
    %v504 = vpop.f32.mrf.mxu0
    %v505 = vadd.f32 0.0, %v504
    %v506 = vpop.f32.mrf.mxu0
    %v507 = vadd.f32 0.0, %v506
    %v508 = vpop.f32.mrf.mxu0
    %v509 = vadd.f32 0.0, %v508
    %510 = vmatprep.mubr.bf16.mxu0 0
    %511 = vmatmul.mubr.bf16.gmra.mxu0 %v153
    %v512 = vpop.f32.mrf.mxu0
    %v513 = vadd.f32 0.0, %v512
    %v514 = vpop.f32.mrf.mxu0
    %v515 = vadd.f32 0.0, %v514
    %v516 = vpop.f32.mrf.mxu0
    %v517 = vadd.f32 0.0, %v516
    %v518 = vpop.f32.mrf.mxu0
    %v519 = vadd.f32 0.0, %v518
    %520 = vmatprep.mubr.bf16.mxu0 0
    %521 = vmatmul.mubr.bf16.gmra.mxu0 %v154
    %v522 = vpop.f32.mrf.mxu0
    %v523 = vadd.f32 0.0, %v522
    %v524 = vpop.f32.mrf.mxu0
    %v525 = vadd.f32 0.0, %v524
    %v526 = vpop.f32.mrf.mxu0
    %v527 = vadd.f32 0.0, %v526
    %v528 = vpop.f32.mrf.mxu0
    %v529 = vadd.f32 0.0, %v528
    %530 = vmatprep.mubr.bf16.mxu0 0
    %531 = vmatmul.mubr.bf16.gmra.mxu0 %v155
    %v532 = vpop.f32.mrf.mxu0
    %v533 = vadd.f32 0.0, %v532
    %v534 = vpop.f32.mrf.mxu0
    %v535 = vadd.f32 0.0, %v534
    %v536 = vpop.f32.mrf.mxu0
    %v537 = vadd.f32 0.0, %v536
    %v538 = vpop.f32.mrf.mxu0
    %v539 = vadd.f32 0.0, %v538
    %540 = vmatprep.mubr.bf16.mxu0 0
    %541 = vmatmul.mubr.bf16.gmra.mxu0 %v156
    %v542 = vpop.f32.mrf.mxu0
    %v543 = vadd.f32 0.0, %v542
    %v544 = vpop.f32.mrf.mxu0
    %v545 = vadd.f32 0.0, %v544
    %v546 = vpop.f32.mrf.mxu0
    %v547 = vadd.f32 0.0, %v546
    %v548 = vpop.f32.mrf.mxu0
    %v549 = vadd.f32 0.0, %v548
    %550 = vdwg.mxu0
    %v551 = vpack.c.bf16 %v364, %v360
    %v552 = vpack.c.bf16 %v374, %v370
    %v553 = vpack.c.bf16 %v384, %v380
    %v554 = vpack.c.bf16 %v394, %v390
    %v555 = vpack.c.bf16 %v404, %v400
    %v556 = vpack.c.bf16 %v414, %v410
    %v557 = vpack.c.bf16 %v424, %v420
    %v558 = vpack.c.bf16 %v434, %v430
    %v559 = vpack.c.bf16 %v366, %v362
    %v560 = vpack.c.bf16 %v376, %v372
    %v561 = vpack.c.bf16 %v386, %v382
    %v562 = vpack.c.bf16 %v396, %v392
    %v563 = vpack.c.bf16 %v406, %v402
    %v564 = vpack.c.bf16 %v416, %v412
    %v565 = vpack.c.bf16 %v426, %v422
    %v566 = vpack.c.bf16 %v436, %v432
    %v567 = vld [vmem:[%s3] sm:$0x1]
    %v569 = vlaneseq
    %v570 = vshrl.u32 %v569, 7
    %v571 = vsub.s32 0, %v570
    %v572 = vrot.slane %v567, %v571
    %v574 = vadd.f32 %v473, %v572
    %v575 = vadd.f32 %v477, %v572
    %v576 = vadd.f32 %v483, %v572
    %v577 = vadd.f32 %v487, %v572
    %v578 = vadd.f32 %v493, %v572
    %v579 = vadd.f32 %v497, %v572
    %v580 = vadd.f32 %v503, %v572
    %v581 = vadd.f32 %v507, %v572
    %v582 = vadd.f32 %v513, %v572
    %v583 = vadd.f32 %v517, %v572
    %v584 = vadd.f32 %v523, %v572
    %v585 = vadd.f32 %v527, %v572
    %v586 = vadd.f32 %v533, %v572
    %v587 = vadd.f32 %v537, %v572
    %v588 = vadd.f32 %v543, %v572
    %v589 = vadd.f32 %v547, %v572
    %v590 = vadd.f32 %v475, 0.0
    %v591 = vadd.f32 %v479, 0.0
    %v592 = vadd.f32 %v485, 0.0
    %v593 = vadd.f32 %v489, 0.0
    %v594 = vadd.f32 %v495, 0.0
    %v595 = vadd.f32 %v499, 0.0
    %v596 = vadd.f32 %v505, 0.0
    %v597 = vadd.f32 %v509, 0.0
    %v598 = vadd.f32 %v515, 0.0
    %v599 = vadd.f32 %v519, 0.0
    %v600 = vadd.f32 %v525, 0.0
    %v601 = vadd.f32 %v529, 0.0
    %v602 = vadd.f32 %v535, 0.0
    %v603 = vadd.f32 %v539, 0.0
    %v604 = vadd.f32 %v545, 0.0
    %v605 = vadd.f32 %v549, 0.0
    %v606 = vld [vmem:[%s1] sm:$0xf]
    %v607 = vld [vmem:[%s1 + $0x4] sm:$0xf]
    %v608 = vld [vmem:[%s1 + $0x8] sm:$0xf]
    %v609 = vld [vmem:[%s1 + $0xc] sm:$0xf]
    %v610 = vld [vmem:[%s1 + $0x10] sm:$0xf]
    %v611 = vld [vmem:[%s1 + $0x14] sm:$0xf]
    %v612 = vld [vmem:[%s1 + $0x18] sm:$0xf]
    %v613 = vld [vmem:[%s1 + $0x1c] sm:$0xf]
    %v614 = vld [vmem:[%s1 + $0x20] sm:$0xf]
    %v615 = vld [vmem:[%s1 + $0x24] sm:$0xf]
    %v616 = vld [vmem:[%s1 + $0x28] sm:$0xf]
    %v617 = vld [vmem:[%s1 + $0x2c] sm:$0xf]
    %v618 = vld [vmem:[%s1 + $0x30] sm:$0xf]
    %v619 = vld [vmem:[%s1 + $0x34] sm:$0xf]
    %v620 = vld [vmem:[%s1 + $0x38] sm:$0xf]
    %v621 = vld [vmem:[%s1 + $0x3c] sm:$0xf]
    %s622 = scalar_lea.vmem %s1, 64
    %v623 = vld [vmem:[%s622] sm:$0xf]
    %v624 = vld [vmem:[%s622 + $0x4] sm:$0xf]
    %v625 = vld [vmem:[%s622 + $0x8] sm:$0xf]
    %v626 = vld [vmem:[%s622 + $0xc] sm:$0xf]
    %v627 = vld [vmem:[%s622 + $0x10] sm:$0xf]
    %v628 = vld [vmem:[%s622 + $0x14] sm:$0xf]
    %v629 = vld [vmem:[%s622 + $0x18] sm:$0xf]
    %v630 = vld [vmem:[%s622 + $0x1c] sm:$0xf]
    %v631 = vld [vmem:[%s622 + $0x20] sm:$0xf]
    %v632 = vld [vmem:[%s622 + $0x24] sm:$0xf]
    %v633 = vld [vmem:[%s622 + $0x28] sm:$0xf]
    %v634 = vld [vmem:[%s622 + $0x2c] sm:$0xf]
    %v635 = vld [vmem:[%s622 + $0x30] sm:$0xf]
    %v636 = vld [vmem:[%s622 + $0x34] sm:$0xf]
    %v637 = vld [vmem:[%s622 + $0x38] sm:$0xf]
    %v638 = vld [vmem:[%s622 + $0x3c] sm:$0xf]
    %v655 = vunpack.c.l.b16 %v623
    %v656 = vunpack.c.l.b16 %v624
    %v657 = vunpack.c.l.b16 %v625
    %v658 = vunpack.c.l.b16 %v626
    %v659 = vunpack.c.l.b16 %v627
    %v660 = vunpack.c.l.b16 %v628
    %v661 = vunpack.c.l.b16 %v629
    %v662 = vunpack.c.l.b16 %v630
    %v663 = vunpack.c.l.b16 %v631
    %v664 = vunpack.c.l.b16 %v632
    %v665 = vunpack.c.l.b16 %v633
    %v666 = vunpack.c.l.b16 %v634
    %v667 = vunpack.c.l.b16 %v635
    %v668 = vunpack.c.l.b16 %v636
    %v669 = vunpack.c.l.b16 %v637
    %v670 = vunpack.c.l.b16 %v638
    %v671 = vpack.c.b16 %v656, %v655
    %v672 = vpack.c.b16 %v658, %v657
    %v673 = vpack.c.b16 %v660, %v659
    %v674 = vpack.c.b16 %v662, %v661
    %v675 = vpack.c.b16 %v664, %v663
    %v676 = vpack.c.b16 %v666, %v665
    %v677 = vpack.c.b16 %v668, %v667
    %v678 = vpack.c.b16 %v670, %v669
    %687 = vmatprep.subr.bf16.mxu0 0
    %688 = vmatpush1.bf16.msra.mxu0 %v566
    %689 = vmatprep.subr.bf16.mxu0 0
    %690 = vmatpush1.bf16.msra.mxu0 %v565
    %691 = vmatprep.subr.bf16.mxu0 0
    %692 = vmatpush1.bf16.msra.mxu0 %v564
    %693 = vmatprep.subr.bf16.mxu0 0
    %694 = vmatpush1.bf16.msra.mxu0 %v563
    %695 = vmatprep.subr.bf16.mxu0 0
    %696 = vmatpush1.bf16.msra.mxu0 %v562
    %697 = vmatprep.subr.bf16.mxu0 0
    %698 = vmatpush1.bf16.msra.mxu0 %v561
    %699 = vmatprep.subr.bf16.mxu0 0
    %700 = vmatpush1.bf16.msra.mxu0 %v560
    %701 = vmatprep.subr.bf16.mxu0 0
    %702 = vmatpush1.bf16.msra.mxu0 %v559
    %703 = vmatprep.subr.bf16.mxu0 0
    %704 = vmatpush2.bf16.msra.mxu0 0
    %705 = vmatprep.subr.bf16.mxu0 0
    %706 = vmatpush2.bf16.msra.mxu0 0
    %707 = vmatprep.subr.bf16.mxu0 0
    %708 = vmatpush2.bf16.msra.mxu0 0
    %709 = vmatprep.subr.bf16.mxu0 0
    %710 = vmatpush2.bf16.msra.mxu0 0
    %711 = vmatprep.subr.bf16.mxu0 0
    %712 = vmatpush2.bf16.msra.mxu0 0
    %713 = vmatprep.subr.bf16.mxu0 0
    %714 = vmatpush2.bf16.msra.mxu0 0
    %715 = vmatprep.subr.bf16.mxu0 0
    %716 = vmatpush2.bf16.msra.mxu0 0
    %717 = vmatprep.subr.bf16.mxu0 0
    %718 = vmatpush2.bf16.msra.mxu0 0
    %719 = vmatprep.mubr.bf16.mxu0 0
    %720 = vmatmul.mubr.bf16.gmra.mxu0 %v671
    %v721 = vpop.f32.mrf.mxu0
    %v722 = vadd.f32 0.0, %v721
    %v723 = vpop.f32.mrf.mxu0
    %v724 = vpop.f32.mrf.mxu0
    %v725 = vadd.f32 0.0, %v724
    %v726 = vpop.f32.mrf.mxu0
    %727 = vmatprep.mubr.bf16.mxu0 0
    %728 = vmatmul.mubr.bf16.gmra.mxu0 %v672
    %v729 = vpop.f32.mrf.mxu0
    %v730 = vadd.f32 0.0, %v729
    %v731 = vpop.f32.mrf.mxu0
    %v732 = vpop.f32.mrf.mxu0
    %v733 = vadd.f32 0.0, %v732
    %v734 = vpop.f32.mrf.mxu0
    %735 = vmatprep.mubr.bf16.mxu0 0
    %736 = vmatmul.mubr.bf16.gmra.mxu0 %v673
    %v737 = vpop.f32.mrf.mxu0
    %v738 = vadd.f32 0.0, %v737
    %v739 = vpop.f32.mrf.mxu0
    %v740 = vpop.f32.mrf.mxu0
    %v741 = vadd.f32 0.0, %v740
    %v742 = vpop.f32.mrf.mxu0
    %743 = vmatprep.mubr.bf16.mxu0 0
    %744 = vmatmul.mubr.bf16.gmra.mxu0 %v674
    %v745 = vpop.f32.mrf.mxu0
    %v746 = vadd.f32 0.0, %v745
    %v747 = vpop.f32.mrf.mxu0
    %v748 = vpop.f32.mrf.mxu0
    %v749 = vadd.f32 0.0, %v748
    %v750 = vpop.f32.mrf.mxu0
    %751 = vmatprep.mubr.bf16.mxu0 0
    %752 = vmatmul.mubr.bf16.gmra.mxu0 %v675
    %v753 = vpop.f32.mrf.mxu0
    %v754 = vadd.f32 0.0, %v753
    %v755 = vpop.f32.mrf.mxu0
    %v756 = vpop.f32.mrf.mxu0
    %v757 = vadd.f32 0.0, %v756
    %v758 = vpop.f32.mrf.mxu0
    %759 = vmatprep.mubr.bf16.mxu0 0
    %760 = vmatmul.mubr.bf16.gmra.mxu0 %v676
    %v761 = vpop.f32.mrf.mxu0
    %v762 = vadd.f32 0.0, %v761
    %v763 = vpop.f32.mrf.mxu0
    %v764 = vpop.f32.mrf.mxu0
    %v765 = vadd.f32 0.0, %v764
    %v766 = vpop.f32.mrf.mxu0
    %767 = vmatprep.mubr.bf16.mxu0 0
    %768 = vmatmul.mubr.bf16.gmra.mxu0 %v677
    %v769 = vpop.f32.mrf.mxu0
    %v770 = vadd.f32 0.0, %v769
    %v771 = vpop.f32.mrf.mxu0
    %v772 = vpop.f32.mrf.mxu0
    %v773 = vadd.f32 0.0, %v772
    %v774 = vpop.f32.mrf.mxu0
    %775 = vmatprep.mubr.bf16.mxu0 0
    %776 = vmatmul.mubr.bf16.gmra.mxu0 %v678
    %v777 = vpop.f32.mrf.mxu0
    %v778 = vadd.f32 0.0, %v777
    %v779 = vpop.f32.mrf.mxu0
    %v780 = vpop.f32.mrf.mxu0
    %v781 = vadd.f32 0.0, %v780
    %v782 = vpop.f32.mrf.mxu0
    %783 = vdwg.mxu0
    %v800 = vunpack.c.l.b16 %v606
    %v801 = vunpack.c.l.b16 %v607
    %v802 = vunpack.c.l.b16 %v608
    %v803 = vunpack.c.l.b16 %v609
    %v804 = vunpack.c.l.b16 %v610
    %v805 = vunpack.c.l.b16 %v611
    %v806 = vunpack.c.l.b16 %v612
    %v807 = vunpack.c.l.b16 %v613
    %v808 = vunpack.c.l.b16 %v614
    %v809 = vunpack.c.l.b16 %v615
    %v810 = vunpack.c.l.b16 %v616
    %v811 = vunpack.c.l.b16 %v617
    %v812 = vunpack.c.l.b16 %v618
    %v813 = vunpack.c.l.b16 %v619
    %v814 = vunpack.c.l.b16 %v620
    %v815 = vunpack.c.l.b16 %v621
    %v816 = vpack.c.b16 %v801, %v800
    %v817 = vpack.c.b16 %v803, %v802
    %v818 = vpack.c.b16 %v805, %v804
    %v819 = vpack.c.b16 %v807, %v806
    %v820 = vpack.c.b16 %v809, %v808
    %v821 = vpack.c.b16 %v811, %v810
    %v822 = vpack.c.b16 %v813, %v812
    %v823 = vpack.c.b16 %v815, %v814
    %832 = vmatprep.subr.bf16.mxu0 0
    %833 = vmatpush1.bf16.msra.mxu0 %v558
    %834 = vmatprep.subr.bf16.mxu0 0
    %835 = vmatpush1.bf16.msra.mxu0 %v557
    %836 = vmatprep.subr.bf16.mxu0 0
    %837 = vmatpush1.bf16.msra.mxu0 %v556
    %838 = vmatprep.subr.bf16.mxu0 0
    %839 = vmatpush1.bf16.msra.mxu0 %v555
    %840 = vmatprep.subr.bf16.mxu0 0
    %841 = vmatpush1.bf16.msra.mxu0 %v554
    %842 = vmatprep.subr.bf16.mxu0 0
    %843 = vmatpush1.bf16.msra.mxu0 %v553
    %844 = vmatprep.subr.bf16.mxu0 0
    %845 = vmatpush1.bf16.msra.mxu0 %v552
    %846 = vmatprep.subr.bf16.mxu0 0
    %847 = vmatpush1.bf16.msra.mxu0 %v551
    %848 = vmatprep.subr.bf16.mxu0 0
    %849 = vmatpush2.bf16.msra.mxu0 0
    %850 = vmatprep.subr.bf16.mxu0 0
    %851 = vmatpush2.bf16.msra.mxu0 0
    %852 = vmatprep.subr.bf16.mxu0 0
    %853 = vmatpush2.bf16.msra.mxu0 0
    %854 = vmatprep.subr.bf16.mxu0 0
    %855 = vmatpush2.bf16.msra.mxu0 0
    %856 = vmatprep.subr.bf16.mxu0 0
    %857 = vmatpush2.bf16.msra.mxu0 0
    %858 = vmatprep.subr.bf16.mxu0 0
    %859 = vmatpush2.bf16.msra.mxu0 0
    %860 = vmatprep.subr.bf16.mxu0 0
    %861 = vmatpush2.bf16.msra.mxu0 0
    %862 = vmatprep.subr.bf16.mxu0 0
    %863 = vmatpush2.bf16.msra.mxu0 0
    %864 = vmatprep.mubr.bf16.mxu0 0
    %865 = vmatmul.mubr.bf16.gmra.mxu0 %v816
    %v866 = vpop.f32.mrf.mxu0
    %v867 = vadd.f32 %v722, %v866
    %v868 = vpop.f32.mrf.mxu0
    %v869 = vpop.f32.mrf.mxu0
    %v870 = vadd.f32 %v725, %v869
    %v871 = vpop.f32.mrf.mxu0
    %872 = vmatprep.mubr.bf16.mxu0 0
    %873 = vmatmul.mubr.bf16.gmra.mxu0 %v817
    %v874 = vpop.f32.mrf.mxu0
    %v875 = vadd.f32 %v730, %v874
    %v876 = vpop.f32.mrf.mxu0
    %v877 = vpop.f32.mrf.mxu0
    %v878 = vadd.f32 %v733, %v877
    %v879 = vpop.f32.mrf.mxu0
    %880 = vmatprep.mubr.bf16.mxu0 0
    %881 = vmatmul.mubr.bf16.gmra.mxu0 %v818
    %v882 = vpop.f32.mrf.mxu0
    %v883 = vadd.f32 %v738, %v882
    %v884 = vpop.f32.mrf.mxu0
    %v885 = vpop.f32.mrf.mxu0
    %v886 = vadd.f32 %v741, %v885
    %v887 = vpop.f32.mrf.mxu0
    %888 = vmatprep.mubr.bf16.mxu0 0
    %889 = vmatmul.mubr.bf16.gmra.mxu0 %v819
    %v890 = vpop.f32.mrf.mxu0
    %v891 = vadd.f32 %v746, %v890
    %v892 = vpop.f32.mrf.mxu0
    %v893 = vpop.f32.mrf.mxu0
    %v894 = vadd.f32 %v749, %v893
    %v895 = vpop.f32.mrf.mxu0
    %896 = vmatprep.mubr.bf16.mxu0 0
    %897 = vmatmul.mubr.bf16.gmra.mxu0 %v820
    %v898 = vpop.f32.mrf.mxu0
    %v899 = vadd.f32 %v754, %v898
    %v900 = vpop.f32.mrf.mxu0
    %v901 = vpop.f32.mrf.mxu0
    %v902 = vadd.f32 %v757, %v901
    %v903 = vpop.f32.mrf.mxu0
    %904 = vmatprep.mubr.bf16.mxu0 0
    %905 = vmatmul.mubr.bf16.gmra.mxu0 %v821
    %v906 = vpop.f32.mrf.mxu0
    %v907 = vadd.f32 %v762, %v906
    %v908 = vpop.f32.mrf.mxu0
    %v909 = vpop.f32.mrf.mxu0
    %v910 = vadd.f32 %v765, %v909
    %v911 = vpop.f32.mrf.mxu0
    %912 = vmatprep.mubr.bf16.mxu0 0
    %913 = vmatmul.mubr.bf16.gmra.mxu0 %v822
    %v914 = vpop.f32.mrf.mxu0
    %v915 = vadd.f32 %v770, %v914
    %v916 = vpop.f32.mrf.mxu0
    %v917 = vpop.f32.mrf.mxu0
    %v918 = vadd.f32 %v773, %v917
    %v919 = vpop.f32.mrf.mxu0
    %920 = vmatprep.mubr.bf16.mxu0 0
    %921 = vmatmul.mubr.bf16.gmra.mxu0 %v823
    %v922 = vpop.f32.mrf.mxu0
    %v923 = vadd.f32 %v778, %v922
    %v924 = vpop.f32.mrf.mxu0
    %v925 = vpop.f32.mrf.mxu0
    %v926 = vadd.f32 %v781, %v925
    %v927 = vpop.f32.mrf.mxu0
    %928 = vdwg.mxu0
    %v929 = vadd.f32 %v574, %v867
    %v930 = vadd.f32 %v575, %v870
    %v931 = vadd.f32 %v576, %v875
    %v932 = vadd.f32 %v577, %v878
    %v933 = vadd.f32 %v578, %v883
    %v934 = vadd.f32 %v579, %v886
    %v935 = vadd.f32 %v580, %v891
    %v936 = vadd.f32 %v581, %v894
    %v937 = vadd.f32 %v582, %v899
    %v938 = vadd.f32 %v583, %v902
    %v939 = vadd.f32 %v584, %v907
    %v940 = vadd.f32 %v585, %v910
    %v941 = vadd.f32 %v586, %v915
    %v942 = vadd.f32 %v587, %v918
    %v943 = vadd.f32 %v588, %v923
    %v944 = vadd.f32 %v589, %v926
    %v945 = vmax.f32 %v929, 0.0
    %v946 = vmax.f32 %v930, 0.0
    %v947 = vmax.f32 %v931, 0.0
    %v948 = vmax.f32 %v932, 0.0
    %v949 = vmax.f32 %v933, 0.0
    %v950 = vmax.f32 %v934, 0.0
    %v951 = vmax.f32 %v935, 0.0
    %v952 = vmax.f32 %v936, 0.0
    %v953 = vmax.f32 %v937, 0.0
    %v954 = vmax.f32 %v938, 0.0
    %v955 = vmax.f32 %v939, 0.0
    %v956 = vmax.f32 %v940, 0.0
    %v957 = vmax.f32 %v941, 0.0
    %v958 = vmax.f32 %v942, 0.0
    %v959 = vmax.f32 %v943, 0.0
    %v960 = vmax.f32 %v944, 0.0
    %v961 = vld [vmem:[%s6] sm:$0xff]
    %v962 = vld [vmem:[%s6 + $0x8] sm:$0xff]
    %v963 = vld [vmem:[%s6 + $0x10] sm:$0xff]
    %v964 = vld [vmem:[%s6 + $0x18] sm:$0xff]
    %v965 = vld [vmem:[%s6 + $0x20] sm:$0xff]
    %v966 = vld [vmem:[%s6 + $0x28] sm:$0xff]
    %v967 = vld [vmem:[%s6 + $0x30] sm:$0xff]
    %v968 = vld [vmem:[%s6 + $0x38] sm:$0xff]
    %v969 = vld [vmem:[%s6 + $0x40] sm:$0xff]
    %v970 = vld [vmem:[%s6 + $0x48] sm:$0xff]
    %v971 = vld [vmem:[%s6 + $0x50] sm:$0xff]
    %v972 = vld [vmem:[%s6 + $0x58] sm:$0xff]
    %v973 = vld [vmem:[%s6 + $0x60] sm:$0xff]
    %v974 = vld [vmem:[%s6 + $0x68] sm:$0xff]
    %v975 = vld [vmem:[%s6 + $0x70] sm:$0xff]
    %v976 = vld [vmem:[%s6 + $0x78] sm:$0xff]
    %978 = vset.pattern.permute.xlu0 0
    %979 = vperm.xlu0 %978, %v961
    %v980 = vpop.permute.xlu0 %979
    %983 = vset.pattern.permute.xlu0 0
    %984 = vperm.xlu0 %983, %v962
    %v985 = vpop.permute.xlu0 %984
    %988 = vset.pattern.permute.xlu0 0
    %989 = vperm.xlu0 %988, %v963
    %v990 = vpop.permute.xlu0 %989
    %993 = vset.pattern.permute.xlu0 0
    %994 = vperm.xlu0 %993, %v964
    %v995 = vpop.permute.xlu0 %994
    %998 = vset.pattern.permute.xlu0 0
    %999 = vperm.xlu0 %998, %v965
    %v1000 = vpop.permute.xlu0 %999
    %1003 = vset.pattern.permute.xlu0 0
    %1004 = vperm.xlu0 %1003, %v966
    %v1005 = vpop.permute.xlu0 %1004
    %1008 = vset.pattern.permute.xlu0 0
    %1009 = vperm.xlu0 %1008, %v967
    %v1010 = vpop.permute.xlu0 %1009
    %1013 = vset.pattern.permute.xlu0 0
    %1014 = vperm.xlu0 %1013, %v968
    %v1015 = vpop.permute.xlu0 %1014
    %1018 = vset.pattern.permute.xlu0 0
    %1019 = vperm.xlu0 %1018, %v969
    %v1020 = vpop.permute.xlu0 %1019
    %1023 = vset.pattern.permute.xlu0 0
    %1024 = vperm.xlu0 %1023, %v970
    %v1025 = vpop.permute.xlu0 %1024
    %1028 = vset.pattern.permute.xlu0 0
    %1029 = vperm.xlu0 %1028, %v971
    %v1030 = vpop.permute.xlu0 %1029
    %1033 = vset.pattern.permute.xlu0 0
    %1034 = vperm.xlu0 %1033, %v972
    %v1035 = vpop.permute.xlu0 %1034
    %1038 = vset.pattern.permute.xlu0 0
    %1039 = vperm.xlu0 %1038, %v973
    %v1040 = vpop.permute.xlu0 %1039
    %1043 = vset.pattern.permute.xlu0 0
    %1044 = vperm.xlu0 %1043, %v974
    %v1045 = vpop.permute.xlu0 %1044
    %1048 = vset.pattern.permute.xlu0 0
    %1049 = vperm.xlu0 %1048, %v975
    %v1050 = vpop.permute.xlu0 %1049
    %1053 = vset.pattern.permute.xlu0 0
    %1054 = vperm.xlu0 %1053, %v976
    %v1055 = vpop.permute.xlu0 %1054
    %v1057 = vmul.f32 %v945, %v980
    %v1058 = vmul.f32 %v946, %v985
    %v1059 = vmul.f32 %v947, %v990
    %v1060 = vmul.f32 %v948, %v995
    %v1061 = vmul.f32 %v949, %v1000
    %v1062 = vmul.f32 %v950, %v1005
    %v1063 = vmul.f32 %v951, %v1010
    %v1064 = vmul.f32 %v952, %v1015
    %v1065 = vmul.f32 %v953, %v1020
    %v1066 = vmul.f32 %v954, %v1025
    %v1067 = vmul.f32 %v955, %v1030
    %v1068 = vmul.f32 %v956, %v1035
    %v1069 = vmul.f32 %v957, %v1040
    %v1070 = vmul.f32 %v958, %v1045
    %v1071 = vmul.f32 %v959, %v1050
    %v1072 = vmul.f32 %v960, %v1055
    %v1073 = vpack.c.bf16 %v1058, %v1057
    %v1074 = vpack.c.bf16 %v1060, %v1059
    %v1075 = vpack.c.bf16 %v1062, %v1061
    %v1076 = vpack.c.bf16 %v1064, %v1063
    %v1077 = vpack.c.bf16 %v1066, %v1065
    %v1078 = vpack.c.bf16 %v1068, %v1067
    %v1079 = vpack.c.bf16 %v1070, %v1069
    %v1080 = vpack.c.bf16 %v1072, %v1071
    %s1081 = scalar_lea.vmem [#allocation5], 256
    %v1082 = vld [vmem:[%s1081] sm:$0xff]
    %v1083 = vld [vmem:[%s1081 + $0x8] sm:$0xff]
    %v1084 = vld [vmem:[%s1081 + $0x10] sm:$0xff]
    %v1085 = vld [vmem:[%s1081 + $0x18] sm:$0xff]
    %v1086 = vld [vmem:[%s1081 + $0x20] sm:$0xff]
    %v1087 = vld [vmem:[%s1081 + $0x28] sm:$0xff]
    %v1088 = vld [vmem:[%s1081 + $0x30] sm:$0xff]
    %v1089 = vld [vmem:[%s1081 + $0x38] sm:$0xff]
    %v1090 = vld [vmem:[%s1081 + $0x40] sm:$0xff]
    %v1091 = vld [vmem:[%s1081 + $0x48] sm:$0xff]
    %v1092 = vld [vmem:[%s1081 + $0x50] sm:$0xff]
    %v1093 = vld [vmem:[%s1081 + $0x58] sm:$0xff]
    %v1094 = vld [vmem:[%s1081 + $0x60] sm:$0xff]
    %v1095 = vld [vmem:[%s1081 + $0x68] sm:$0xff]
    %v1096 = vld [vmem:[%s1081 + $0x70] sm:$0xff]
    %v1097 = vld [vmem:[%s1081 + $0x78] sm:$0xff]
    %v1098 = vld [vmem:[%s1081 + $0x80] sm:$0xff]
    %v1099 = vld [vmem:[%s1081 + $0x88] sm:$0xff]
    %v1100 = vld [vmem:[%s1081 + $0x90] sm:$0xff]
    %v1101 = vld [vmem:[%s1081 + $0x98] sm:$0xff]
    %v1102 = vld [vmem:[%s1081 + $0xa0] sm:$0xff]
    %v1103 = vld [vmem:[%s1081 + $0xa8] sm:$0xff]
    %v1104 = vld [vmem:[%s1081 + $0xb0] sm:$0xff]
    %v1105 = vld [vmem:[%s1081 + $0xb8] sm:$0xff]
    %v1106 = vld [vmem:[%s1081 + $0xc0] sm:$0xff]
    %v1107 = vld [vmem:[%s1081 + $0xc8] sm:$0xff]
    %v1108 = vld [vmem:[%s1081 + $0xd0] sm:$0xff]
    %v1109 = vld [vmem:[%s1081 + $0xd8] sm:$0xff]
    %v1110 = vld [vmem:[%s1081 + $0xe0] sm:$0xff]
    %v1111 = vld [vmem:[%s1081 + $0xe8] sm:$0xff]
    %v1112 = vld [vmem:[%s1081 + $0xf0] sm:$0xff]
    %v1113 = vld [vmem:[%s1081 + $0xf8] sm:$0xff]
    %v1146 = vunpack.c.l.b16 %v1082
    %v1147 = vunpack.c.h.b16 %v1082
    %v1148 = vunpack.c.l.b16 %v1083
    %v1149 = vunpack.c.h.b16 %v1083
    %v1150 = vunpack.c.l.b16 %v1084
    %v1151 = vunpack.c.h.b16 %v1084
    %v1152 = vunpack.c.l.b16 %v1085
    %v1153 = vunpack.c.h.b16 %v1085
    %v1154 = vunpack.c.l.b16 %v1086
    %v1155 = vunpack.c.h.b16 %v1086
    %v1156 = vunpack.c.l.b16 %v1087
    %v1157 = vunpack.c.h.b16 %v1087
    %v1158 = vunpack.c.l.b16 %v1088
    %v1159 = vunpack.c.h.b16 %v1088
    %v1160 = vunpack.c.l.b16 %v1089
    %v1161 = vunpack.c.h.b16 %v1089
    %v1162 = vunpack.c.l.b16 %v1090
    %v1163 = vunpack.c.h.b16 %v1090
    %v1164 = vunpack.c.l.b16 %v1091
    %v1165 = vunpack.c.h.b16 %v1091
    %v1166 = vunpack.c.l.b16 %v1092
    %v1167 = vunpack.c.h.b16 %v1092
    %v1168 = vunpack.c.l.b16 %v1093
    %v1169 = vunpack.c.h.b16 %v1093
    %v1170 = vunpack.c.l.b16 %v1094
    %v1171 = vunpack.c.h.b16 %v1094
    %v1172 = vunpack.c.l.b16 %v1095
    %v1173 = vunpack.c.h.b16 %v1095
    %v1174 = vunpack.c.l.b16 %v1096
    %v1175 = vunpack.c.h.b16 %v1096
    %v1176 = vunpack.c.l.b16 %v1097
    %v1177 = vunpack.c.h.b16 %v1097
    %v1178 = vunpack.c.l.b16 %v1098
    %v1179 = vunpack.c.h.b16 %v1098
    %v1180 = vunpack.c.l.b16 %v1099
    %v1181 = vunpack.c.h.b16 %v1099
    %v1182 = vunpack.c.l.b16 %v1100
    %v1183 = vunpack.c.h.b16 %v1100
    %v1184 = vunpack.c.l.b16 %v1101
    %v1185 = vunpack.c.h.b16 %v1101
    %v1186 = vunpack.c.l.b16 %v1102
    %v1187 = vunpack.c.h.b16 %v1102
    %v1188 = vunpack.c.l.b16 %v1103
    %v1189 = vunpack.c.h.b16 %v1103
    %v1190 = vunpack.c.l.b16 %v1104
    %v1191 = vunpack.c.h.b16 %v1104
    %v1192 = vunpack.c.l.b16 %v1105
    %v1193 = vunpack.c.h.b16 %v1105
    %v1194 = vunpack.c.l.b16 %v1106
    %v1195 = vunpack.c.h.b16 %v1106
    %v1196 = vunpack.c.l.b16 %v1107
    %v1197 = vunpack.c.h.b16 %v1107
    %v1198 = vunpack.c.l.b16 %v1108
    %v1199 = vunpack.c.h.b16 %v1108
    %v1200 = vunpack.c.l.b16 %v1109
    %v1201 = vunpack.c.h.b16 %v1109
    %v1202 = vunpack.c.l.b16 %v1110
    %v1203 = vunpack.c.h.b16 %v1110
    %v1204 = vunpack.c.l.b16 %v1111
    %v1205 = vunpack.c.h.b16 %v1111
    %v1206 = vunpack.c.l.b16 %v1112
    %v1207 = vunpack.c.h.b16 %v1112
    %v1208 = vunpack.c.l.b16 %v1113
    %v1209 = vunpack.c.h.b16 %v1113
    %v1210 = vpack.c.b16 %v1150, %v1146
    %v1211 = vpack.c.b16 %v1151, %v1147
    %v1212 = vpack.c.b16 %v1152, %v1148
    %v1213 = vpack.c.b16 %v1153, %v1149
    %v1214 = vpack.c.b16 %v1158, %v1154
    %v1215 = vpack.c.b16 %v1159, %v1155
    %v1216 = vpack.c.b16 %v1160, %v1156
    %v1217 = vpack.c.b16 %v1161, %v1157
    %v1218 = vpack.c.b16 %v1166, %v1162
    %v1219 = vpack.c.b16 %v1167, %v1163
    %v1220 = vpack.c.b16 %v1168, %v1164
    %v1221 = vpack.c.b16 %v1169, %v1165
    %v1222 = vpack.c.b16 %v1174, %v1170
    %v1223 = vpack.c.b16 %v1175, %v1171
    %v1224 = vpack.c.b16 %v1176, %v1172
    %v1225 = vpack.c.b16 %v1177, %v1173
    %v1226 = vpack.c.b16 %v1182, %v1178
    %v1227 = vpack.c.b16 %v1183, %v1179
    %v1228 = vpack.c.b16 %v1184, %v1180
    %v1229 = vpack.c.b16 %v1185, %v1181
    %v1230 = vpack.c.b16 %v1190, %v1186
    %v1231 = vpack.c.b16 %v1191, %v1187
    %v1232 = vpack.c.b16 %v1192, %v1188
    %v1233 = vpack.c.b16 %v1193, %v1189
    %v1234 = vpack.c.b16 %v1198, %v1194
    %v1235 = vpack.c.b16 %v1199, %v1195
    %v1236 = vpack.c.b16 %v1200, %v1196
    %v1237 = vpack.c.b16 %v1201, %v1197
    %v1238 = vpack.c.b16 %v1206, %v1202
    %v1239 = vpack.c.b16 %v1207, %v1203
    %v1240 = vpack.c.b16 %v1208, %v1204
    %v1241 = vpack.c.b16 %v1209, %v1205
    %1274 = vmatprep.subr.bf16.mxu0 %v1239
    %1275 = vmatpush1.bf16.msra.mxu0 %v1238
    %1276 = vmatprep.subr.bf16.mxu0 %v1235
    %1277 = vmatpush1.bf16.msra.mxu0 %v1234
    %1278 = vmatprep.subr.bf16.mxu0 %v1231
    %1279 = vmatpush1.bf16.msra.mxu0 %v1230
    %1280 = vmatprep.subr.bf16.mxu0 %v1227
    %1281 = vmatpush1.bf16.msra.mxu0 %v1226
    %1282 = vmatprep.subr.bf16.mxu0 %v1223
    %1283 = vmatpush1.bf16.msra.mxu0 %v1222
    %1284 = vmatprep.subr.bf16.mxu0 %v1219
    %1285 = vmatpush1.bf16.msra.mxu0 %v1218
    %1286 = vmatprep.subr.bf16.mxu0 %v1215
    %1287 = vmatpush1.bf16.msra.mxu0 %v1214
    %1288 = vmatprep.subr.bf16.mxu0 %v1211
    %1289 = vmatpush1.bf16.msra.mxu0 %v1210
    %1290 = vmatprep.subr.bf16.mxu0 0
    %1291 = vmatpush2.bf16.msra.mxu0 0
    %1292 = vmatprep.subr.bf16.mxu0 0
    %1293 = vmatpush2.bf16.msra.mxu0 0
    %1294 = vmatprep.subr.bf16.mxu0 0
    %1295 = vmatpush2.bf16.msra.mxu0 0
    %1296 = vmatprep.subr.bf16.mxu0 0
    %1297 = vmatpush2.bf16.msra.mxu0 0
    %1298 = vmatprep.subr.bf16.mxu0 0
    %1299 = vmatpush2.bf16.msra.mxu0 0
    %1300 = vmatprep.subr.bf16.mxu0 0
    %1301 = vmatpush2.bf16.msra.mxu0 0
    %1302 = vmatprep.subr.bf16.mxu0 0
    %1303 = vmatpush2.bf16.msra.mxu0 0
    %1304 = vmatprep.subr.bf16.mxu0 0
    %1305 = vmatpush2.bf16.msra.mxu0 0
    %1306 = vmatprep.mubr.bf16.mxu0 0
    %1307 = vmatmul.mubr.bf16.gmra.mxu0 %v1073
    %v1308 = vpop.f32.mrf.mxu0
    %v1309 = vadd.f32 0.0, %v1308
    %v1310 = vpop.f32.mrf.mxu0
    %v1311 = vadd.f32 0.0, %v1310
    %v1312 = vpop.f32.mrf.mxu0
    %v1313 = vadd.f32 0.0, %v1312
    %v1314 = vpop.f32.mrf.mxu0
    %v1315 = vadd.f32 0.0, %v1314
    %1316 = vmatprep.mubr.bf16.mxu0 0
    %1317 = vmatmul.mubr.bf16.gmra.mxu0 %v1074
    %v1318 = vpop.f32.mrf.mxu0
    %v1319 = vadd.f32 0.0, %v1318
    %v1320 = vpop.f32.mrf.mxu0
    %v1321 = vadd.f32 0.0, %v1320
    %v1322 = vpop.f32.mrf.mxu0
    %v1323 = vadd.f32 0.0, %v1322
    %v1324 = vpop.f32.mrf.mxu0
    %v1325 = vadd.f32 0.0, %v1324
    %1326 = vmatprep.mubr.bf16.mxu0 0
    %1327 = vmatmul.mubr.bf16.gmra.mxu0 %v1075
    %v1328 = vpop.f32.mrf.mxu0
    %v1329 = vadd.f32 0.0, %v1328
    %v1330 = vpop.f32.mrf.mxu0
    %v1331 = vadd.f32 0.0, %v1330
    %v1332 = vpop.f32.mrf.mxu0
    %v1333 = vadd.f32 0.0, %v1332
    %v1334 = vpop.f32.mrf.mxu0
    %v1335 = vadd.f32 0.0, %v1334
    %1336 = vmatprep.mubr.bf16.mxu0 0
    %1337 = vmatmul.mubr.bf16.gmra.mxu0 %v1076
    %v1338 = vpop.f32.mrf.mxu0
    %v1339 = vadd.f32 0.0, %v1338
    %v1340 = vpop.f32.mrf.mxu0
    %v1341 = vadd.f32 0.0, %v1340
    %v1342 = vpop.f32.mrf.mxu0
    %v1343 = vadd.f32 0.0, %v1342
    %v1344 = vpop.f32.mrf.mxu0
    %v1345 = vadd.f32 0.0, %v1344
    %1346 = vmatprep.mubr.bf16.mxu0 0
    %1347 = vmatmul.mubr.bf16.gmra.mxu0 %v1077
    %v1348 = vpop.f32.mrf.mxu0
    %v1349 = vadd.f32 0.0, %v1348
    %v1350 = vpop.f32.mrf.mxu0
    %v1351 = vadd.f32 0.0, %v1350
    %v1352 = vpop.f32.mrf.mxu0
    %v1353 = vadd.f32 0.0, %v1352
    %v1354 = vpop.f32.mrf.mxu0
    %v1355 = vadd.f32 0.0, %v1354
    %1356 = vmatprep.mubr.bf16.mxu0 0
    %1357 = vmatmul.mubr.bf16.gmra.mxu0 %v1078
    %v1358 = vpop.f32.mrf.mxu0
    %v1359 = vadd.f32 0.0, %v1358
    %v1360 = vpop.f32.mrf.mxu0
    %v1361 = vadd.f32 0.0, %v1360
    %v1362 = vpop.f32.mrf.mxu0
    %v1363 = vadd.f32 0.0, %v1362
    %v1364 = vpop.f32.mrf.mxu0
    %v1365 = vadd.f32 0.0, %v1364
    %1366 = vmatprep.mubr.bf16.mxu0 0
    %1367 = vmatmul.mubr.bf16.gmra.mxu0 %v1079
    %v1368 = vpop.f32.mrf.mxu0
    %v1369 = vadd.f32 0.0, %v1368
    %v1370 = vpop.f32.mrf.mxu0
    %v1371 = vadd.f32 0.0, %v1370
    %v1372 = vpop.f32.mrf.mxu0
    %v1373 = vadd.f32 0.0, %v1372
    %v1374 = vpop.f32.mrf.mxu0
    %v1375 = vadd.f32 0.0, %v1374
    %1376 = vmatprep.mubr.bf16.mxu0 0
    %1377 = vmatmul.mubr.bf16.gmra.mxu0 %v1080
    %v1378 = vpop.f32.mrf.mxu0
    %v1379 = vadd.f32 0.0, %v1378
    %v1380 = vpop.f32.mrf.mxu0
    %v1381 = vadd.f32 0.0, %v1380
    %v1382 = vpop.f32.mrf.mxu0
    %v1383 = vadd.f32 0.0, %v1382
    %v1384 = vpop.f32.mrf.mxu0
    %v1385 = vadd.f32 0.0, %v1384
    %1386 = vdwg.mxu0
    %1387 = vmatprep.subr.bf16.mxu0 %v1241
    %1388 = vmatpush1.bf16.msra.mxu0 %v1240
    %1389 = vmatprep.subr.bf16.mxu0 %v1237
    %1390 = vmatpush1.bf16.msra.mxu0 %v1236
    %1391 = vmatprep.subr.bf16.mxu0 %v1233
    %1392 = vmatpush1.bf16.msra.mxu0 %v1232
    %1393 = vmatprep.subr.bf16.mxu0 %v1229
    %1394 = vmatpush1.bf16.msra.mxu0 %v1228
    %1395 = vmatprep.subr.bf16.mxu0 %v1225
    %1396 = vmatpush1.bf16.msra.mxu0 %v1224
    %1397 = vmatprep.subr.bf16.mxu0 %v1221
    %1398 = vmatpush1.bf16.msra.mxu0 %v1220
    %1399 = vmatprep.subr.bf16.mxu0 %v1217
    %1400 = vmatpush1.bf16.msra.mxu0 %v1216
    %1401 = vmatprep.subr.bf16.mxu0 %v1213
    %1402 = vmatpush1.bf16.msra.mxu0 %v1212
    %1403 = vmatprep.subr.bf16.mxu0 0
    %1404 = vmatpush2.bf16.msra.mxu0 0
    %1405 = vmatprep.subr.bf16.mxu0 0
    %1406 = vmatpush2.bf16.msra.mxu0 0
    %1407 = vmatprep.subr.bf16.mxu0 0
    %1408 = vmatpush2.bf16.msra.mxu0 0
    %1409 = vmatprep.subr.bf16.mxu0 0
    %1410 = vmatpush2.bf16.msra.mxu0 0
    %1411 = vmatprep.subr.bf16.mxu0 0
    %1412 = vmatpush2.bf16.msra.mxu0 0
    %1413 = vmatprep.subr.bf16.mxu0 0
    %1414 = vmatpush2.bf16.msra.mxu0 0
    %1415 = vmatprep.subr.bf16.mxu0 0
    %1416 = vmatpush2.bf16.msra.mxu0 0
    %1417 = vmatprep.subr.bf16.mxu0 0
    %1418 = vmatpush2.bf16.msra.mxu0 0
    %1419 = vmatprep.mubr.bf16.mxu0 0
    %1420 = vmatmul.mubr.bf16.gmra.mxu0 %v1073
    %v1421 = vpop.f32.mrf.mxu0
    %v1422 = vadd.f32 0.0, %v1421
    %v1423 = vpop.f32.mrf.mxu0
    %v1424 = vadd.f32 0.0, %v1423
    %v1425 = vpop.f32.mrf.mxu0
    %v1426 = vadd.f32 0.0, %v1425
    %v1427 = vpop.f32.mrf.mxu0
    %v1428 = vadd.f32 0.0, %v1427
    %1429 = vmatprep.mubr.bf16.mxu0 0
    %1430 = vmatmul.mubr.bf16.gmra.mxu0 %v1074
    %v1431 = vpop.f32.mrf.mxu0
    %v1432 = vadd.f32 0.0, %v1431
    %v1433 = vpop.f32.mrf.mxu0
    %v1434 = vadd.f32 0.0, %v1433
    %v1435 = vpop.f32.mrf.mxu0
    %v1436 = vadd.f32 0.0, %v1435
    %v1437 = vpop.f32.mrf.mxu0
    %v1438 = vadd.f32 0.0, %v1437
    %1439 = vmatprep.mubr.bf16.mxu0 0
    %1440 = vmatmul.mubr.bf16.gmra.mxu0 %v1075
    %v1441 = vpop.f32.mrf.mxu0
    %v1442 = vadd.f32 0.0, %v1441
    %v1443 = vpop.f32.mrf.mxu0
    %v1444 = vadd.f32 0.0, %v1443
    %v1445 = vpop.f32.mrf.mxu0
    %v1446 = vadd.f32 0.0, %v1445
    %v1447 = vpop.f32.mrf.mxu0
    %v1448 = vadd.f32 0.0, %v1447
    %1449 = vmatprep.mubr.bf16.mxu0 0
    %1450 = vmatmul.mubr.bf16.gmra.mxu0 %v1076
    %v1451 = vpop.f32.mrf.mxu0
    %v1452 = vadd.f32 0.0, %v1451
    %v1453 = vpop.f32.mrf.mxu0
    %v1454 = vadd.f32 0.0, %v1453
    %v1455 = vpop.f32.mrf.mxu0
    %v1456 = vadd.f32 0.0, %v1455
    %v1457 = vpop.f32.mrf.mxu0
    %v1458 = vadd.f32 0.0, %v1457
    %1459 = vmatprep.mubr.bf16.mxu0 0
    %1460 = vmatmul.mubr.bf16.gmra.mxu0 %v1077
    %v1461 = vpop.f32.mrf.mxu0
    %v1462 = vadd.f32 0.0, %v1461
    %v1463 = vpop.f32.mrf.mxu0
    %v1464 = vadd.f32 0.0, %v1463
    %v1465 = vpop.f32.mrf.mxu0
    %v1466 = vadd.f32 0.0, %v1465
    %v1467 = vpop.f32.mrf.mxu0
    %v1468 = vadd.f32 0.0, %v1467
    %1469 = vmatprep.mubr.bf16.mxu0 0
    %1470 = vmatmul.mubr.bf16.gmra.mxu0 %v1078
    %v1471 = vpop.f32.mrf.mxu0
    %v1472 = vadd.f32 0.0, %v1471
    %v1473 = vpop.f32.mrf.mxu0
    %v1474 = vadd.f32 0.0, %v1473
    %v1475 = vpop.f32.mrf.mxu0
    %v1476 = vadd.f32 0.0, %v1475
    %v1477 = vpop.f32.mrf.mxu0
    %v1478 = vadd.f32 0.0, %v1477
    %1479 = vmatprep.mubr.bf16.mxu0 0
    %1480 = vmatmul.mubr.bf16.gmra.mxu0 %v1079
    %v1481 = vpop.f32.mrf.mxu0
    %v1482 = vadd.f32 0.0, %v1481
    %v1483 = vpop.f32.mrf.mxu0
    %v1484 = vadd.f32 0.0, %v1483
    %v1485 = vpop.f32.mrf.mxu0
    %v1486 = vadd.f32 0.0, %v1485
    %v1487 = vpop.f32.mrf.mxu0
    %v1488 = vadd.f32 0.0, %v1487
    %1489 = vmatprep.mubr.bf16.mxu0 0
    %1490 = vmatmul.mubr.bf16.gmra.mxu0 %v1080
    %v1491 = vpop.f32.mrf.mxu0
    %v1492 = vadd.f32 0.0, %v1491
    %v1493 = vpop.f32.mrf.mxu0
    %v1494 = vadd.f32 0.0, %v1493
    %v1495 = vpop.f32.mrf.mxu0
    %v1496 = vadd.f32 0.0, %v1495
    %v1497 = vpop.f32.mrf.mxu0
    %v1498 = vadd.f32 0.0, %v1497
    %1499 = vdwg.mxu0
    %v1500 = vpack.c.bf16 %v1313, %v1309
    %v1501 = vpack.c.bf16 %v1323, %v1319
    %v1502 = vpack.c.bf16 %v1333, %v1329
    %v1503 = vpack.c.bf16 %v1343, %v1339
    %v1504 = vpack.c.bf16 %v1353, %v1349
    %v1505 = vpack.c.bf16 %v1363, %v1359
    %v1506 = vpack.c.bf16 %v1373, %v1369
    %v1507 = vpack.c.bf16 %v1383, %v1379
    %v1508 = vpack.c.bf16 %v1315, %v1311
    %v1509 = vpack.c.bf16 %v1325, %v1321
    %v1510 = vpack.c.bf16 %v1335, %v1331
    %v1511 = vpack.c.bf16 %v1345, %v1341
    %v1512 = vpack.c.bf16 %v1355, %v1351
    %v1513 = vpack.c.bf16 %v1365, %v1361
    %v1514 = vpack.c.bf16 %v1375, %v1371
    %v1515 = vpack.c.bf16 %v1385, %v1381
    %s1516 = scalar_lea.vmem %s3, 1
    %v1517 = vld [vmem:[%s1516] sm:$0x1]
    %v1519 = vlaneseq
    %v1520 = vshrl.u32 %v1519, 7
    %v1521 = vsub.s32 0, %v1520
    %v1522 = vrot.slane %v1517, %v1521
    %v1524 = vadd.f32 %v1422, %v1522
    %v1525 = vadd.f32 %v1426, %v1522
    %v1526 = vadd.f32 %v1432, %v1522
    %v1527 = vadd.f32 %v1436, %v1522
    %v1528 = vadd.f32 %v1442, %v1522
    %v1529 = vadd.f32 %v1446, %v1522
    %v1530 = vadd.f32 %v1452, %v1522
    %v1531 = vadd.f32 %v1456, %v1522
    %v1532 = vadd.f32 %v1462, %v1522
    %v1533 = vadd.f32 %v1466, %v1522
    %v1534 = vadd.f32 %v1472, %v1522
    %v1535 = vadd.f32 %v1476, %v1522
    %v1536 = vadd.f32 %v1482, %v1522
    %v1537 = vadd.f32 %v1486, %v1522
    %v1538 = vadd.f32 %v1492, %v1522
    %v1539 = vadd.f32 %v1496, %v1522
    %v1540 = vadd.f32 %v590, %v1424
    %v1541 = vadd.f32 %v591, %v1428
    %v1542 = vadd.f32 %v592, %v1434
    %v1543 = vadd.f32 %v593, %v1438
    %v1544 = vadd.f32 %v594, %v1444
    %v1545 = vadd.f32 %v595, %v1448
    %v1546 = vadd.f32 %v596, %v1454
    %v1547 = vadd.f32 %v597, %v1458
    %v1548 = vadd.f32 %v598, %v1464
    %v1549 = vadd.f32 %v599, %v1468
    %v1550 = vadd.f32 %v600, %v1474
    %v1551 = vadd.f32 %v601, %v1478
    %v1552 = vadd.f32 %v602, %v1484
    %v1553 = vadd.f32 %v603, %v1488
    %v1554 = vadd.f32 %v604, %v1494
    %v1555 = vadd.f32 %v605, %v1498
    %1556 = vmatprep.subr.bf16.mxu0 0
    %1557 = vmatpush1.bf16.msra.mxu0 %v1515
    %1558 = vmatprep.subr.bf16.mxu0 0
    %1559 = vmatpush1.bf16.msra.mxu0 %v1514
    %1560 = vmatprep.subr.bf16.mxu0 0
    %1561 = vmatpush1.bf16.msra.mxu0 %v1513
    %1562 = vmatprep.subr.bf16.mxu0 0
    %1563 = vmatpush1.bf16.msra.mxu0 %v1512
    %1564 = vmatprep.subr.bf16.mxu0 0
    %1565 = vmatpush1.bf16.msra.mxu0 %v1511
    %1566 = vmatprep.subr.bf16.mxu0 0
    %1567 = vmatpush1.bf16.msra.mxu0 %v1510
    %1568 = vmatprep.subr.bf16.mxu0 0
    %1569 = vmatpush1.bf16.msra.mxu0 %v1509
    %1570 = vmatprep.subr.bf16.mxu0 0
    %1571 = vmatpush1.bf16.msra.mxu0 %v1508
    %1572 = vmatprep.subr.bf16.mxu0 0
    %1573 = vmatpush2.bf16.msra.mxu0 0
    %1574 = vmatprep.subr.bf16.mxu0 0
    %1575 = vmatpush2.bf16.msra.mxu0 0
    %1576 = vmatprep.subr.bf16.mxu0 0
    %1577 = vmatpush2.bf16.msra.mxu0 0
    %1578 = vmatprep.subr.bf16.mxu0 0
    %1579 = vmatpush2.bf16.msra.mxu0 0
    %1580 = vmatprep.subr.bf16.mxu0 0
    %1581 = vmatpush2.bf16.msra.mxu0 0
    %1582 = vmatprep.subr.bf16.mxu0 0
    %1583 = vmatpush2.bf16.msra.mxu0 0
    %1584 = vmatprep.subr.bf16.mxu0 0
    %1585 = vmatpush2.bf16.msra.mxu0 0
    %1586 = vmatprep.subr.bf16.mxu0 0
    %1587 = vmatpush2.bf16.msra.mxu0 0
    %1588 = vmatprep.mubr.bf16.mxu0 0
    %1589 = vmatmul.mubr.bf16.gmra.mxu0 %v671
    %v1590 = vpop.f32.mrf.mxu0
    %v1591 = vadd.f32 0.0, %v1590
    %v1592 = vpop.f32.mrf.mxu0
    %v1593 = vpop.f32.mrf.mxu0
    %v1594 = vadd.f32 0.0, %v1593
    %v1595 = vpop.f32.mrf.mxu0
    %1596 = vmatprep.mubr.bf16.mxu0 0
    %1597 = vmatmul.mubr.bf16.gmra.mxu0 %v672
    %v1598 = vpop.f32.mrf.mxu0
    %v1599 = vadd.f32 0.0, %v1598
    %v1600 = vpop.f32.mrf.mxu0
    %v1601 = vpop.f32.mrf.mxu0
    %v1602 = vadd.f32 0.0, %v1601
    %v1603 = vpop.f32.mrf.mxu0
    %1604 = vmatprep.mubr.bf16.mxu0 0
    %1605 = vmatmul.mubr.bf16.gmra.mxu0 %v673
    %v1606 = vpop.f32.mrf.mxu0
    %v1607 = vadd.f32 0.0, %v1606
    %v1608 = vpop.f32.mrf.mxu0
    %v1609 = vpop.f32.mrf.mxu0
    %v1610 = vadd.f32 0.0, %v1609
    %v1611 = vpop.f32.mrf.mxu0
    %1612 = vmatprep.mubr.bf16.mxu0 0
    %1613 = vmatmul.mubr.bf16.gmra.mxu0 %v674
    %v1614 = vpop.f32.mrf.mxu0
    %v1615 = vadd.f32 0.0, %v1614
    %v1616 = vpop.f32.mrf.mxu0
    %v1617 = vpop.f32.mrf.mxu0
    %v1618 = vadd.f32 0.0, %v1617
    %v1619 = vpop.f32.mrf.mxu0
    %1620 = vmatprep.mubr.bf16.mxu0 0
    %1621 = vmatmul.mubr.bf16.gmra.mxu0 %v675
    %v1622 = vpop.f32.mrf.mxu0
    %v1623 = vadd.f32 0.0, %v1622
    %v1624 = vpop.f32.mrf.mxu0
    %v1625 = vpop.f32.mrf.mxu0
    %v1626 = vadd.f32 0.0, %v1625
    %v1627 = vpop.f32.mrf.mxu0
    %1628 = vmatprep.mubr.bf16.mxu0 0
    %1629 = vmatmul.mubr.bf16.gmra.mxu0 %v676
    %v1630 = vpop.f32.mrf.mxu0
    %v1631 = vadd.f32 0.0, %v1630
    %v1632 = vpop.f32.mrf.mxu0
    %v1633 = vpop.f32.mrf.mxu0
    %v1634 = vadd.f32 0.0, %v1633
    %v1635 = vpop.f32.mrf.mxu0
    %1636 = vmatprep.mubr.bf16.mxu0 0
    %1637 = vmatmul.mubr.bf16.gmra.mxu0 %v677
    %v1638 = vpop.f32.mrf.mxu0
    %v1639 = vadd.f32 0.0, %v1638
    %v1640 = vpop.f32.mrf.mxu0
    %v1641 = vpop.f32.mrf.mxu0
    %v1642 = vadd.f32 0.0, %v1641
    %v1643 = vpop.f32.mrf.mxu0
    %1644 = vmatprep.mubr.bf16.mxu0 0
    %1645 = vmatmul.mubr.bf16.gmra.mxu0 %v678
    %v1646 = vpop.f32.mrf.mxu0
    %v1647 = vadd.f32 0.0, %v1646
    %v1648 = vpop.f32.mrf.mxu0
    %v1649 = vpop.f32.mrf.mxu0
    %v1650 = vadd.f32 0.0, %v1649
    %v1651 = vpop.f32.mrf.mxu0
    %1652 = vdwg.mxu0
    %1653 = vmatprep.subr.bf16.mxu0 0
    %1654 = vmatpush1.bf16.msra.mxu0 %v1507
    %1655 = vmatprep.subr.bf16.mxu0 0
    %1656 = vmatpush1.bf16.msra.mxu0 %v1506
    %1657 = vmatprep.subr.bf16.mxu0 0
    %1658 = vmatpush1.bf16.msra.mxu0 %v1505
    %1659 = vmatprep.subr.bf16.mxu0 0
    %1660 = vmatpush1.bf16.msra.mxu0 %v1504
    %1661 = vmatprep.subr.bf16.mxu0 0
    %1662 = vmatpush1.bf16.msra.mxu0 %v1503
    %1663 = vmatprep.subr.bf16.mxu0 0
    %1664 = vmatpush1.bf16.msra.mxu0 %v1502
    %1665 = vmatprep.subr.bf16.mxu0 0
    %1666 = vmatpush1.bf16.msra.mxu0 %v1501
    %1667 = vmatprep.subr.bf16.mxu0 0
    %1668 = vmatpush1.bf16.msra.mxu0 %v1500
    %1669 = vmatprep.subr.bf16.mxu0 0
    %1670 = vmatpush2.bf16.msra.mxu0 0
    %1671 = vmatprep.subr.bf16.mxu0 0
    %1672 = vmatpush2.bf16.msra.mxu0 0
    %1673 = vmatprep.subr.bf16.mxu0 0
    %1674 = vmatpush2.bf16.msra.mxu0 0
    %1675 = vmatprep.subr.bf16.mxu0 0
    %1676 = vmatpush2.bf16.msra.mxu0 0
    %1677 = vmatprep.subr.bf16.mxu0 0
    %1678 = vmatpush2.bf16.msra.mxu0 0
    %1679 = vmatprep.subr.bf16.mxu0 0
    %1680 = vmatpush2.bf16.msra.mxu0 0
    %1681 = vmatprep.subr.bf16.mxu0 0
    %1682 = vmatpush2.bf16.msra.mxu0 0
    %1683 = vmatprep.subr.bf16.mxu0 0
    %1684 = vmatpush2.bf16.msra.mxu0 0
    %1685 = vmatprep.mubr.bf16.mxu0 0
    %1686 = vmatmul.mubr.bf16.gmra.mxu0 %v816
    %v1687 = vpop.f32.mrf.mxu0
    %v1688 = vadd.f32 %v1591, %v1687
    %v1689 = vpop.f32.mrf.mxu0
    %v1690 = vpop.f32.mrf.mxu0
    %v1691 = vadd.f32 %v1594, %v1690
    %v1692 = vpop.f32.mrf.mxu0
    %1693 = vmatprep.mubr.bf16.mxu0 0
    %1694 = vmatmul.mubr.bf16.gmra.mxu0 %v817
    %v1695 = vpop.f32.mrf.mxu0
    %v1696 = vadd.f32 %v1599, %v1695
    %v1697 = vpop.f32.mrf.mxu0
    %v1698 = vpop.f32.mrf.mxu0
    %v1699 = vadd.f32 %v1602, %v1698
    %v1700 = vpop.f32.mrf.mxu0
    %1701 = vmatprep.mubr.bf16.mxu0 0
    %1702 = vmatmul.mubr.bf16.gmra.mxu0 %v818
    %v1703 = vpop.f32.mrf.mxu0
    %v1704 = vadd.f32 %v1607, %v1703
    %v1705 = vpop.f32.mrf.mxu0
    %v1706 = vpop.f32.mrf.mxu0
    %v1707 = vadd.f32 %v1610, %v1706
    %v1708 = vpop.f32.mrf.mxu0
    %1709 = vmatprep.mubr.bf16.mxu0 0
    %1710 = vmatmul.mubr.bf16.gmra.mxu0 %v819
    %v1711 = vpop.f32.mrf.mxu0
    %v1712 = vadd.f32 %v1615, %v1711
    %v1713 = vpop.f32.mrf.mxu0
    %v1714 = vpop.f32.mrf.mxu0
    %v1715 = vadd.f32 %v1618, %v1714
    %v1716 = vpop.f32.mrf.mxu0
    %1717 = vmatprep.mubr.bf16.mxu0 0
    %1718 = vmatmul.mubr.bf16.gmra.mxu0 %v820
    %v1719 = vpop.f32.mrf.mxu0
    %v1720 = vadd.f32 %v1623, %v1719
    %v1721 = vpop.f32.mrf.mxu0
    %v1722 = vpop.f32.mrf.mxu0
    %v1723 = vadd.f32 %v1626, %v1722
    %v1724 = vpop.f32.mrf.mxu0
    %1725 = vmatprep.mubr.bf16.mxu0 0
    %1726 = vmatmul.mubr.bf16.gmra.mxu0 %v821
    %v1727 = vpop.f32.mrf.mxu0
    %v1728 = vadd.f32 %v1631, %v1727
    %v1729 = vpop.f32.mrf.mxu0
    %v1730 = vpop.f32.mrf.mxu0
    %v1731 = vadd.f32 %v1634, %v1730
    %v1732 = vpop.f32.mrf.mxu0
    %1733 = vmatprep.mubr.bf16.mxu0 0
    %1734 = vmatmul.mubr.bf16.gmra.mxu0 %v822
    %v1735 = vpop.f32.mrf.mxu0
    %v1736 = vadd.f32 %v1639, %v1735
    %v1737 = vpop.f32.mrf.mxu0
    %v1738 = vpop.f32.mrf.mxu0
    %v1739 = vadd.f32 %v1642, %v1738
    %v1740 = vpop.f32.mrf.mxu0
    %1741 = vmatprep.mubr.bf16.mxu0 0
    %1742 = vmatmul.mubr.bf16.gmra.mxu0 %v823
    %v1743 = vpop.f32.mrf.mxu0
    %v1744 = vadd.f32 %v1647, %v1743
    %v1745 = vpop.f32.mrf.mxu0
    %v1746 = vpop.f32.mrf.mxu0
    %v1747 = vadd.f32 %v1650, %v1746
    %v1748 = vpop.f32.mrf.mxu0
    %1749 = vdwg.mxu0
    %v1750 = vadd.f32 %v1524, %v1688
    %v1751 = vadd.f32 %v1525, %v1691
    %v1752 = vadd.f32 %v1526, %v1696
    %v1753 = vadd.f32 %v1527, %v1699
    %v1754 = vadd.f32 %v1528, %v1704
    %v1755 = vadd.f32 %v1529, %v1707
    %v1756 = vadd.f32 %v1530, %v1712
    %v1757 = vadd.f32 %v1531, %v1715
    %v1758 = vadd.f32 %v1532, %v1720
    %v1759 = vadd.f32 %v1533, %v1723
    %v1760 = vadd.f32 %v1534, %v1728
    %v1761 = vadd.f32 %v1535, %v1731
    %v1762 = vadd.f32 %v1536, %v1736
    %v1763 = vadd.f32 %v1537, %v1739
    %v1764 = vadd.f32 %v1538, %v1744
    %v1765 = vadd.f32 %v1539, %v1747
    %v1766 = vmax.f32 %v1750, 0.0
    %v1767 = vmax.f32 %v1751, 0.0
    %v1768 = vmax.f32 %v1752, 0.0
    %v1769 = vmax.f32 %v1753, 0.0
    %v1770 = vmax.f32 %v1754, 0.0
    %v1771 = vmax.f32 %v1755, 0.0
    %v1772 = vmax.f32 %v1756, 0.0
    %v1773 = vmax.f32 %v1757, 0.0
    %v1774 = vmax.f32 %v1758, 0.0
    %v1775 = vmax.f32 %v1759, 0.0
    %v1776 = vmax.f32 %v1760, 0.0
    %v1777 = vmax.f32 %v1761, 0.0
    %v1778 = vmax.f32 %v1762, 0.0
    %v1779 = vmax.f32 %v1763, 0.0
    %v1780 = vmax.f32 %v1764, 0.0
    %v1781 = vmax.f32 %v1765, 0.0
    %v1782 = vmul.f32 %v1766, %v980
    %v1783 = vmul.f32 %v1767, %v985
    %v1784 = vmul.f32 %v1768, %v990
    %v1785 = vmul.f32 %v1769, %v995
    %v1786 = vmul.f32 %v1770, %v1000
    %v1787 = vmul.f32 %v1771, %v1005
    %v1788 = vmul.f32 %v1772, %v1010
    %v1789 = vmul.f32 %v1773, %v1015
    %v1790 = vmul.f32 %v1774, %v1020
    %v1791 = vmul.f32 %v1775, %v1025
    %v1792 = vmul.f32 %v1776, %v1030
    %v1793 = vmul.f32 %v1777, %v1035
    %v1794 = vmul.f32 %v1778, %v1040
    %v1795 = vmul.f32 %v1779, %v1045
    %v1796 = vmul.f32 %v1780, %v1050
    %v1797 = vmul.f32 %v1781, %v1055
    %v1798 = vpack.c.bf16 %v1783, %v1782
    %v1799 = vpack.c.bf16 %v1785, %v1784
    %v1800 = vpack.c.bf16 %v1787, %v1786
    %v1801 = vpack.c.bf16 %v1789, %v1788
    %v1802 = vpack.c.bf16 %v1791, %v1790
    %v1803 = vpack.c.bf16 %v1793, %v1792
    %v1804 = vpack.c.bf16 %v1795, %v1794
    %v1805 = vpack.c.bf16 %v1797, %v1796
    %v1806 = vld [vmem:[#allocation7] sm:$0xf]
    %v1807 = vld [vmem:[#allocation7 + $0x4] sm:$0xf]
    %v1808 = vld [vmem:[#allocation7 + $0x8] sm:$0xf]
    %v1809 = vld [vmem:[#allocation7 + $0xc] sm:$0xf]
    %v1810 = vld [vmem:[#allocation7 + $0x10] sm:$0xf]
    %v1811 = vld [vmem:[#allocation7 + $0x14] sm:$0xf]
    %v1812 = vld [vmem:[#allocation7 + $0x18] sm:$0xf]
    %v1813 = vld [vmem:[#allocation7 + $0x1c] sm:$0xf]
    %v1814 = vld [vmem:[#allocation7 + $0x20] sm:$0xf]
    %v1815 = vld [vmem:[#allocation7 + $0x24] sm:$0xf]
    %v1816 = vld [vmem:[#allocation7 + $0x28] sm:$0xf]
    %v1817 = vld [vmem:[#allocation7 + $0x2c] sm:$0xf]
    %v1818 = vld [vmem:[#allocation7 + $0x30] sm:$0xf]
    %v1819 = vld [vmem:[#allocation7 + $0x34] sm:$0xf]
    %v1820 = vld [vmem:[#allocation7 + $0x38] sm:$0xf]
    %v1821 = vld [vmem:[#allocation7 + $0x3c] sm:$0xf]
    %v1838 = vunpack.c.l.b16 %v1806
    %v1839 = vunpack.c.l.b16 %v1807
    %v1840 = vunpack.c.l.b16 %v1808
    %v1841 = vunpack.c.l.b16 %v1809
    %v1842 = vunpack.c.l.b16 %v1810
    %v1843 = vunpack.c.l.b16 %v1811
    %v1844 = vunpack.c.l.b16 %v1812
    %v1845 = vunpack.c.l.b16 %v1813
    %v1846 = vunpack.c.l.b16 %v1814
    %v1847 = vunpack.c.l.b16 %v1815
    %v1848 = vunpack.c.l.b16 %v1816
    %v1849 = vunpack.c.l.b16 %v1817
    %v1850 = vunpack.c.l.b16 %v1818
    %v1851 = vunpack.c.l.b16 %v1819
    %v1852 = vunpack.c.l.b16 %v1820
    %v1853 = vunpack.c.l.b16 %v1821
    %v1854 = vpack.c.b16 %v1839, %v1838
    %v1855 = vpack.c.b16 %v1841, %v1840
    %v1856 = vpack.c.b16 %v1843, %v1842
    %v1857 = vpack.c.b16 %v1845, %v1844
    %v1858 = vpack.c.b16 %v1847, %v1846
    %v1859 = vpack.c.b16 %v1849, %v1848
    %v1860 = vpack.c.b16 %v1851, %v1850
    %v1861 = vpack.c.b16 %v1853, %v1852
    %1870 = vmatprep.subr.bf16.mxu0 0
    %1871 = vmatpush1.bf16.msra.mxu0 %v1861
    %1872 = vmatprep.subr.bf16.mxu0 0
    %1873 = vmatpush1.bf16.msra.mxu0 %v1860
    %1874 = vmatprep.subr.bf16.mxu0 0
    %1875 = vmatpush1.bf16.msra.mxu0 %v1859
    %1876 = vmatprep.subr.bf16.mxu0 0
    %1877 = vmatpush1.bf16.msra.mxu0 %v1858
    %1878 = vmatprep.subr.bf16.mxu0 0
    %1879 = vmatpush1.bf16.msra.mxu0 %v1857
    %1880 = vmatprep.subr.bf16.mxu0 0
    %1881 = vmatpush1.bf16.msra.mxu0 %v1856
    %1882 = vmatprep.subr.bf16.mxu0 0
    %1883 = vmatpush1.bf16.msra.mxu0 %v1855
    %1884 = vmatprep.subr.bf16.mxu0 0
    %1885 = vmatpush1.bf16.msra.mxu0 %v1854
    %1886 = vmatprep.subr.bf16.mxu0 0
    %1887 = vmatpush2.bf16.msra.mxu0 0
    %1888 = vmatprep.subr.bf16.mxu0 0
    %1889 = vmatpush2.bf16.msra.mxu0 0
    %1890 = vmatprep.subr.bf16.mxu0 0
    %1891 = vmatpush2.bf16.msra.mxu0 0
    %1892 = vmatprep.subr.bf16.mxu0 0
    %1893 = vmatpush2.bf16.msra.mxu0 0
    %1894 = vmatprep.subr.bf16.mxu0 0
    %1895 = vmatpush2.bf16.msra.mxu0 0
    %1896 = vmatprep.subr.bf16.mxu0 0
    %1897 = vmatpush2.bf16.msra.mxu0 0
    %1898 = vmatprep.subr.bf16.mxu0 0
    %1899 = vmatpush2.bf16.msra.mxu0 0
    %1900 = vmatprep.subr.bf16.mxu0 0
    %1901 = vmatpush2.bf16.msra.mxu0 0
    %1902 = vmatprep.mubr.bf16.mxu0 0
    %1903 = vmatmul.mubr.bf16.gmra.mxu0 %v1798
    %v1904 = vpop.f32.mrf.mxu0
    %v1905 = vadd.f32 0.0, %v1904
    %v1906 = vpop.f32.mrf.mxu0
    %v1907 = vpop.f32.mrf.mxu0
    %v1908 = vadd.f32 0.0, %v1907
    %v1909 = vpop.f32.mrf.mxu0
    %1910 = vmatprep.mubr.bf16.mxu0 0
    %1911 = vmatmul.mubr.bf16.gmra.mxu0 %v1799
    %v1912 = vpop.f32.mrf.mxu0
    %v1913 = vadd.f32 0.0, %v1912
    %v1914 = vpop.f32.mrf.mxu0
    %v1915 = vpop.f32.mrf.mxu0
    %v1916 = vadd.f32 0.0, %v1915
    %v1917 = vpop.f32.mrf.mxu0
    %1918 = vmatprep.mubr.bf16.mxu0 0
    %1919 = vmatmul.mubr.bf16.gmra.mxu0 %v1800
    %v1920 = vpop.f32.mrf.mxu0
    %v1921 = vadd.f32 0.0, %v1920
    %v1922 = vpop.f32.mrf.mxu0
    %v1923 = vpop.f32.mrf.mxu0
    %v1924 = vadd.f32 0.0, %v1923
    %v1925 = vpop.f32.mrf.mxu0
    %1926 = vmatprep.mubr.bf16.mxu0 0
    %1927 = vmatmul.mubr.bf16.gmra.mxu0 %v1801
    %v1928 = vpop.f32.mrf.mxu0
    %v1929 = vadd.f32 0.0, %v1928
    %v1930 = vpop.f32.mrf.mxu0
    %v1931 = vpop.f32.mrf.mxu0
    %v1932 = vadd.f32 0.0, %v1931
    %v1933 = vpop.f32.mrf.mxu0
    %1934 = vmatprep.mubr.bf16.mxu0 0
    %1935 = vmatmul.mubr.bf16.gmra.mxu0 %v1802
    %v1936 = vpop.f32.mrf.mxu0
    %v1937 = vadd.f32 0.0, %v1936
    %v1938 = vpop.f32.mrf.mxu0
    %v1939 = vpop.f32.mrf.mxu0
    %v1940 = vadd.f32 0.0, %v1939
    %v1941 = vpop.f32.mrf.mxu0
    %1942 = vmatprep.mubr.bf16.mxu0 0
    %1943 = vmatmul.mubr.bf16.gmra.mxu0 %v1803
    %v1944 = vpop.f32.mrf.mxu0
    %v1945 = vadd.f32 0.0, %v1944
    %v1946 = vpop.f32.mrf.mxu0
    %v1947 = vpop.f32.mrf.mxu0
    %v1948 = vadd.f32 0.0, %v1947
    %v1949 = vpop.f32.mrf.mxu0
    %1950 = vmatprep.mubr.bf16.mxu0 0
    %1951 = vmatmul.mubr.bf16.gmra.mxu0 %v1804
    %v1952 = vpop.f32.mrf.mxu0
    %v1953 = vadd.f32 0.0, %v1952
    %v1954 = vpop.f32.mrf.mxu0
    %v1955 = vpop.f32.mrf.mxu0
    %v1956 = vadd.f32 0.0, %v1955
    %v1957 = vpop.f32.mrf.mxu0
    %1958 = vmatprep.mubr.bf16.mxu0 0
    %1959 = vmatmul.mubr.bf16.gmra.mxu0 %v1805
    %v1960 = vpop.f32.mrf.mxu0
    %v1961 = vadd.f32 0.0, %v1960
    %v1962 = vpop.f32.mrf.mxu0
    %v1963 = vpop.f32.mrf.mxu0
    %v1964 = vadd.f32 0.0, %v1963
    %v1965 = vpop.f32.mrf.mxu0
    %1966 = vdwg.mxu0
    %v1967 = vadd.f32 %v1540, %v1905
    %v1968 = vadd.f32 %v1541, %v1908
    %v1969 = vadd.f32 %v1542, %v1913
    %v1970 = vadd.f32 %v1543, %v1916
    %v1971 = vadd.f32 %v1544, %v1921
    %v1972 = vadd.f32 %v1545, %v1924
    %v1973 = vadd.f32 %v1546, %v1929
    %v1974 = vadd.f32 %v1547, %v1932
    %v1975 = vadd.f32 %v1548, %v1937
    %v1976 = vadd.f32 %v1549, %v1940
    %v1977 = vadd.f32 %v1550, %v1945
    %v1978 = vadd.f32 %v1551, %v1948
    %v1979 = vadd.f32 %v1552, %v1953
    %v1980 = vadd.f32 %v1553, %v1956
    %v1981 = vadd.f32 %v1554, %v1961
    %v1982 = vadd.f32 %v1555, %v1964
    %v1983 = vld [vmem:[%s5] sm:$0x1]
    %v1985 = vlaneseq
    %v1986 = vshrl.u32 %v1985, 7
    %v1987 = vsub.s32 0, %v1986
    %v1988 = vrot.slane %v1983, %v1987
    %v1990 = vadd.f32 %v1967, %v1988
    %v1991 = vadd.f32 %v1968, %v1988
    %v1992 = vadd.f32 %v1969, %v1988
    %v1993 = vadd.f32 %v1970, %v1988
    %v1994 = vadd.f32 %v1971, %v1988
    %v1995 = vadd.f32 %v1972, %v1988
    %v1996 = vadd.f32 %v1973, %v1988
    %v1997 = vadd.f32 %v1974, %v1988
    %v1998 = vadd.f32 %v1975, %v1988
    %v1999 = vadd.f32 %v1976, %v1988
    %v2000 = vadd.f32 %v1977, %v1988
    %v2001 = vadd.f32 %v1978, %v1988
    %v2002 = vadd.f32 %v1979, %v1988
    %v2003 = vadd.f32 %v1980, %v1988
    %v2004 = vadd.f32 %v1981, %v1988
    %v2005 = vadd.f32 %v1982, %v1988
    %2006 = vst [vmem:[#allocation8] sm:$0xff] %v1990
    %2007 = vst [vmem:[#allocation8 + $0x8] sm:$0xff] %v1991
    %2008 = vst [vmem:[#allocation8 + $0x10] sm:$0xff] %v1992
    %2009 = vst [vmem:[#allocation8 + $0x18] sm:$0xff] %v1993
    %2010 = vst [vmem:[#allocation8 + $0x20] sm:$0xff] %v1994
    %2011 = vst [vmem:[#allocation8 + $0x28] sm:$0xff] %v1995
    %2012 = vst [vmem:[#allocation8 + $0x30] sm:$0xff] %v1996
    %2013 = vst [vmem:[#allocation8 + $0x38] sm:$0xff] %v1997
    %2014 = vst [vmem:[#allocation8 + $0x40] sm:$0xff] %v1998
    %2015 = vst [vmem:[#allocation8 + $0x48] sm:$0xff] %v1999
    %2016 = vst [vmem:[#allocation8 + $0x50] sm:$0xff] %v2000
    %2017 = vst [vmem:[#allocation8 + $0x58] sm:$0xff] %v2001
    %2018 = vst [vmem:[#allocation8 + $0x60] sm:$0xff] %v2002
    %2019 = vst [vmem:[#allocation8 + $0x68] sm:$0xff] %v2003
    %2020 = vst [vmem:[#allocation8 + $0x70] sm:$0xff] %v2004
    %2021 = vst [vmem:[#allocation8 + $0x78] sm:$0xff] %v2005
    // Predicated region
    $region42: #{tpu_custom_call.1} parent=1 // pred_check
      _
    $region43: #{tpu_custom_call.1} parent=1 // pred_check_branch
      %2023 = sbr.rel (0) target = $region45
    $region44: #{tpu_custom_call.1} parent=1 // pred_region
      %s2025 = ssub.s32 2048, 2048
      %2026 = vsyncadd [#allocation4], %s2025
      %s2027 = sshll.u32 [#allocation8], 4
      %s2028 = int_to_ptr.vmem [resolvable:$true] %s2027
      %2033 = dma.vmem_to_hbm [thread:$0]  %s2028, 2048, %s7, [#allocation4], 128, 128, 8
    $region45: #{tpu_custom_call.1} parent=1 // pred_fallthru
      _
    // Predicated region
    $region46: #{tpu_custom_call.1} parent=1 // pred_check
      _
    $region47: #{tpu_custom_call.1} parent=1 // pred_check_branch
      %2035 = sbr.rel (0) target = $region49
    $region48: #{tpu_custom_call.1} parent=1 // pred_region
      %2036 = dma.done [#allocation4], 2048
    $region49: #{tpu_custom_call.1} parent=1 // pred_fallthru
      _
    %2037 = vsyncpa [#allocation3], 1
    %2038 = vsyncpa [#allocation6], 1
    %2039 = vsyncpa [#allocation4], 1

</llo_original>
